<compile_context>
chip_gen: v5e
topology: v5e:2x2
jax: 0.10.0
libtpu: 0.0.40
codegen_flags: <defaults>
</compile_context>

<pallas_src>
import functools

import jax
import jax.numpy as jnp
from jax.experimental import pallas as pl
from jax.experimental.pallas import tpu as pltpu


def _se_conv_bn_kernel(gate_ref, x_ref, w_ref, gamma_ref, beta_ref, o_ref, *, eps):
    # gate_ref  : (1, Cin)        pre-sigmoid SE gate (per input channel)
    # x_ref     : (Cin, M)        NCHW activations, H*W flattened (no transpose)
    # w_ref     : (TCout, Cin)    block of the 1x1-conv weight (torch OIHW squeezed)
    # gamma/beta: (TCout, 1)      BN affine params for this Cout block
    # o_ref     : (TCout, M)
    g = jax.nn.sigmoid(gate_ref[...])                         # (1, Cin)     -- EUP
    w_scaled = w_ref[...] * g                                 # fold gate into weight (tiny VALU)
    y = jnp.dot(w_scaled, x_ref[...],
                preferred_element_type=jnp.float32)           # (TCout, M)   -- MXU

    # BatchNorm2d training-mode statistics over the batch*spatial axis (M), biased variance,
    # single pass: var = E[y^2] - mean^2.
    mean = jnp.mean(y, axis=1, keepdims=True)                 # (TCout, 1)   -- XLU reduce
    mean_sq = jnp.mean(y * y, axis=1, keepdims=True)          # (TCout, 1)
    var = mean_sq - mean * mean
    inv = jax.lax.rsqrt(var + eps)                            # EUP
    o_ref[...] = (y - mean) * inv * gamma_ref[...] + beta_ref[...]


def se_conv_bn(x374_nchw, x378_nchw, w_oihw, gamma, beta, *, eps=1e-3, cout_block=88):
    """sigmoid(x378) * x374 -> Conv2d 1x1 (no bias) -> BatchNorm2d (training-mode stats)."""
    N, Cin, H, W = x374_nchw.shape
    Cout = w_oihw.shape[0]
    assert N == 1, "kernel layout assumes N == 1 (as in the source module)"
    assert Cout % cout_block == 0 and cout_block % 8 == 0
    M = H * W

    # Layout plumbing: all free reshapes (no transposes, no HBM copies).
    x = x374_nchw.reshape(Cin, M)          # (Cin, M)
    gate = x378_nchw.reshape(1, Cin)       # (1, Cin)
    w = w_oihw.reshape(Cout, Cin)          # (Cout, Cin)
    gamma2 = gamma.reshape(Cout, 1)
    beta2 = beta.reshape(Cout, 1)

    n_blocks = Cout // cout_block

    out = pl.pallas_call(
        functools.partial(_se_conv_bn_kernel, eps=eps),
        out_shape=jax.ShapeDtypeStruct((Cout, M), jnp.float32),
        grid=(n_blocks,),
        in_specs=[
            pl.BlockSpec((1, Cin), lambda i: (0, 0)),            # gate  (resident across grid)
            pl.BlockSpec((Cin, M), lambda i: (0, 0)),            # x     (resident across grid)
            pl.BlockSpec((cout_block, Cin), lambda i: (i, 0)),   # W block
            pl.BlockSpec((cout_block, 1), lambda i: (i, 0)),     # gamma block
            pl.BlockSpec((cout_block, 1), lambda i: (i, 0)),     # beta block
        ],
        out_specs=pl.BlockSpec((cout_block, M), lambda i: (i, 0)),
        compiler_params=pltpu.CompilerParams(
            dimension_semantics=("parallel",),
            vmem_limit_bytes=16 << 20,
        ),
    )(gate, x, w, gamma2, beta2)

    # Free reshape back to NCHW (N == 1).
    return out.reshape(N, Cout, H, W)


def _reference(x374, x378, w_oihw, gamma, beta, eps=1e-3):
    g = jax.nn.sigmoid(x378)                                   # (N, Cin, 1, 1)
    xg = g * x374                                              # (N, Cin, H, W)
    w2 = w_oihw.reshape(w_oihw.shape[0], w_oihw.shape[1])      # (Cout, Cin)
    y = jnp.einsum("nchw,oc->nohw", xg, w2)
    mean = jnp.mean(y, axis=(0, 2, 3), keepdims=True)
    var = jnp.mean((y - mean) ** 2, axis=(0, 2, 3), keepdims=True)
    return (y - mean) / jnp.sqrt(var + eps) * gamma.reshape(1, -1, 1, 1) + beta.reshape(1, -1, 1, 1)


if __name__ == "__main__":
    key = jax.random.PRNGKey(0)
    k1, k2, k3 = jax.random.split(key, 3)

    # Shapes implied by the module: x374 [1,1056,14,14], x378 [1,1056,1,1], Conv2d(1056->176, 1x1).
    N, Cin, H, W, Cout = 1, 1056, 14, 14, 176

    x374 = jax.random.normal(k1, (N, Cin, H, W), dtype=jnp.float32)
    x378 = jax.random.normal(k2, (N, Cin, 1, 1), dtype=jnp.float32)

    # Deterministic parameter init (conv weight OIHW 1x1; BN affine = torch defaults).
    w_oihw = jax.random.normal(k3, (Cout, Cin, 1, 1), dtype=jnp.float32) * 0.02
    gamma = jnp.ones((Cout,), dtype=jnp.float32)
    beta = jnp.zeros((Cout,), dtype=jnp.float32)

    out = se_conv_bn(x374, x378, w_oihw, gamma, beta)
    out = jax.block_until_ready(out)

    ref = _reference(x374, x378, w_oihw, gamma, beta)
    assert out.shape == (N, Cout, H, W), out.shape
    assert jnp.allclose(out, ref, atol=1e-3, rtol=1e-3), float(jnp.max(jnp.abs(out - ref)))

    print("KERNEL_OK")
</pallas_src>

<mosaic_0001>
module attributes {stable_mosaic.version = 11 : i64} {
  func.func @_se_conv_bn_kernel(%arg0: i32, %arg1: memref<1x1056xf32, #tpu.memory_space<vmem>>, %arg2: memref<1056x196xf32, #tpu.memory_space<vmem>>, %arg3: memref<88x1056xf32, #tpu.memory_space<vmem>>, %arg4: memref<88x1xf32, #tpu.memory_space<vmem>>, %arg5: memref<88x1xf32, #tpu.memory_space<vmem>>, %arg6: memref<88x196xf32, #tpu.memory_space<vmem>>) attributes {dimension_semantics = [#tpu.dimension_semantics<parallel>], iteration_bounds = array<i64: 2>, scalar_prefetch = 0 : i64, scratch_operands = 0 : i64, tpu.core_type = #tpu.core_type<tc>, window_params = [{pipeline_mode = #tpu.pipeline_mode<synchronous>, transform_indices = @transform_0, window_bounds = array<i64: 1, 1056>}, {pipeline_mode = #tpu.pipeline_mode<synchronous>, transform_indices = @transform_1, window_bounds = array<i64: 1056, 196>}, {transform_indices = @transform_2, window_bounds = array<i64: 88, 1056>}, {transform_indices = @transform_3, window_bounds = array<i64: 88, 1>}, {transform_indices = @transform_4, window_bounds = array<i64: 88, 1>}, {transform_indices = @transform_5, window_bounds = array<i64: 88, 196>}]} {
    %c0 = arith.constant 0 : index
    %c0_0 = arith.constant 0 : index
    %0 = vector.load %arg1[%c0, %c0_0] : memref<1x1056xf32, #tpu.memory_space<vmem>>, vector<1x1056xf32>
    %1 = arith.negf %0 : vector<1x1056xf32>
    %2 = math.exp %1 : vector<1x1056xf32>
    %cst = arith.constant 1.000000e+00 : f32
    %3 = vector.broadcast %cst : f32 to vector<1x1056xf32>
    %4 = arith.addf %3, %2 : vector<1x1056xf32>
    %5 = arith.divf %3, %4 : vector<1x1056xf32>
    %c0_1 = arith.constant 0 : index
    %c0_2 = arith.constant 0 : index
    %6 = vector.load %arg3[%c0_1, %c0_2] : memref<88x1056xf32, #tpu.memory_space<vmem>>, vector<88x1056xf32>
    %7 = vector.broadcast %5 : vector<1x1056xf32> to vector<88x1056xf32>
    %8 = arith.mulf %6, %7 : vector<88x1056xf32>
    %c0_3 = arith.constant 0 : index
    %c0_4 = arith.constant 0 : index
    %9 = vector.load %arg2[%c0_3, %c0_4] : memref<1056x196xf32, #tpu.memory_space<vmem>>, vector<1056x196xf32>
    %cst_5 = arith.constant dense<0.000000e+00> : vector<88x196xf32>
    %10 = tpu.matmul %8, %9, %cst_5 {dimension_numbers = #tpu.dot_dimension_numbers<[1], [0], [0], [1], [0, 0, 1, 1], [], []>} : vector<88x1056xf32>, vector<1056x196xf32>, vector<88x196xf32> -> vector<88x196xf32>
    %cst_6 = arith.constant dense<0.000000e+00> : vector<88xf32>
    %11 = vector.multi_reduction <add>, %10, %cst_6 [1] : vector<88x196xf32> to vector<88xf32>
    %12 = vector.shape_cast %11 : vector<88xf32> to vector<88x1xf32>
    %cst_7 = arith.constant 1.960000e+02 : f32
    %13 = vector.broadcast %cst_7 : f32 to vector<88x1xf32>
    %14 = arith.divf %12, %13 : vector<88x1xf32>
    %15 = arith.mulf %10, %10 : vector<88x196xf32>
    %cst_8 = arith.constant dense<0.000000e+00> : vector<88xf32>
    %16 = vector.multi_reduction <add>, %15, %cst_8 [1] : vector<88x196xf32> to vector<88xf32>
    %17 = vector.shape_cast %16 : vector<88xf32> to vector<88x1xf32>
    %cst_9 = arith.constant 1.960000e+02 : f32
    %18 = vector.broadcast %cst_9 : f32 to vector<88x1xf32>
    %19 = arith.divf %17, %18 : vector<88x1xf32>
    %20 = arith.mulf %14, %14 : vector<88x1xf32>
    %21 = arith.subf %19, %20 : vector<88x1xf32>
    %cst_10 = arith.constant 1.000000e-03 : f32
    %22 = vector.broadcast %cst_10 : f32 to vector<88x1xf32>
    %23 = arith.addf %21, %22 : vector<88x1xf32>
    %24 = math.rsqrt %23 : vector<88x1xf32>
    %25 = vector.broadcast %14 : vector<88x1xf32> to vector<88x196xf32>
    %26 = arith.subf %10, %25 : vector<88x196xf32>
    %27 = vector.broadcast %24 : vector<88x1xf32> to vector<88x196xf32>
    %28 = arith.mulf %26, %27 : vector<88x196xf32>
    %c0_11 = arith.constant 0 : index
    %c0_12 = arith.constant 0 : index
    %29 = vector.load %arg4[%c0_11, %c0_12] : memref<88x1xf32, #tpu.memory_space<vmem>>, vector<88x1xf32>
    %30 = vector.broadcast %29 : vector<88x1xf32> to vector<88x196xf32>
    %31 = arith.mulf %28, %30 : vector<88x196xf32>
    %c0_13 = arith.constant 0 : index
    %c0_14 = arith.constant 0 : index
    %32 = vector.load %arg5[%c0_13, %c0_14] : memref<88x1xf32, #tpu.memory_space<vmem>>, vector<88x1xf32>
    %33 = vector.broadcast %32 : vector<88x1xf32> to vector<88x196xf32>
    %34 = arith.addf %31, %33 : vector<88x196xf32>
    %c0_15 = arith.constant 0 : index
    %c0_16 = arith.constant 0 : index
    %35 = vector.load %arg6[%c0_15, %c0_16] : memref<88x196xf32, #tpu.memory_space<vmem>>, vector<88x196xf32>
    tpu.vector_store %arg6[%c0_15, %c0_16], %34 {strides = array<i32>} : memref<88x196xf32, #tpu.memory_space<vmem>>, vector<88x196xf32>,
    return
  }
  func.func @transform_0(%arg0: i32) -> (i32, i32) {
    %c0_i32 = arith.constant 0 : i32
    %c0_i32_0 = arith.constant 0 : i32
    %c0_i32_1 = arith.constant 0 : i32
    return %c0_i32, %c0_i32_0 : i32, i32
  }
  func.func @transform_1(%arg0: i32) -> (i32, i32) {
    %c0_i32 = arith.constant 0 : i32
    %c0_i32_0 = arith.constant 0 : i32
    %c0_i32_1 = arith.constant 0 : i32
    return %c0_i32, %c0_i32_0 : i32, i32
  }
  func.func @transform_2(%arg0: i32) -> (i32, i32) {
    %c0_i32 = arith.constant 0 : i32
    %c0_i32_0 = arith.constant 0 : i32
    return %arg0, %c0_i32 : i32, i32
  }
  func.func @transform_3(%arg0: i32) -> (i32, i32) {
    %c0_i32 = arith.constant 0 : i32
    %c0_i32_0 = arith.constant 0 : i32
    return %arg0, %c0_i32 : i32, i32
  }
  func.func @transform_4(%arg0: i32) -> (i32, i32) {
    %c0_i32 = arith.constant 0 : i32
    %c0_i32_0 = arith.constant 0 : i32
    return %arg0, %c0_i32 : i32, i32
  }
  func.func @transform_5(%arg0: i32) -> (i32, i32) {
    %c0_i32 = arith.constant 0 : i32
    %c0_i32_0 = arith.constant 0 : i32
    return %arg0, %c0_i32 : i32, i32
  }
}

</mosaic_0001>

<llo_original>
// kernel: tpu_custom_call.1
$region0: #{tpu_custom_call.1}
  #allocation0 [shape = 'u32[]', space=smem, size = 0x4, offset = 0x4, fixed_abs, tag = 'smem constant byte address 0x4 - core index']
  #allocation1 [shape = 'u32[72,128]{1,0:T(1,128)}', space=vmem, size = 0x9000, scoped, tag = 'internal scratch']
  %s0 = inlined_call_operand.vmem [shape: f32[1,1056], index: 0, kind: input, shape index: {}]
  %s1 = inlined_call_operand.vmem [shape: f32[1056,196], index: 1, kind: input, shape index: {}]
  %s2 = inlined_call_operand.vmem [shape: f32[176,1056], index: 2, kind: input, shape index: {}]
  %s3 = inlined_call_operand.vmem [shape: f32[176,1], index: 3, kind: input, shape index: {}]
  %s4 = inlined_call_operand.vmem [shape: f32[176,1], index: 4, kind: input, shape index: {}]
  %s5 = inlined_call_operand.hbm [shape: f32[176,196], index: 5, kind: output, shape index: {}]
  %s6 = sld [smem:[#allocation0]]
  $region53: #{tpu_custom_call.1} parent=0
    _
  %s8 = ssub.s32 1, %s6
  %s9 = scalar_select 0, %s8, %s6
  $region1: #{tpu_custom_call.1} parent=0
    #allocation2 [shape = 'u8[180224]{0}', space=vmem, size = 0x2c000, scoped, tag = 'output window, operand 0']
    #allocation3 [shape = 's32[2]{0}', space=sflag, size = 0x8, scoped, tag = 'scoped memory for tpu_custom_call.1']
    %10 = vsyncpa [#allocation3], 0
    %s11 = scalar_lea.sflag [#allocation3], 1
    %12 = vsyncpa %s11, 0
    loop: start=0, step=1, limit=4
    $region2: #{tpu_custom_call.1} parent=1 // loop_pre_header
      _
    $region3: #{tpu_custom_call.1} parent=1 // loop_header
      %s14 = sphi 0, %s18
      %p15 = scmp.ge.s32.totalorder %s14, 4
      %s22 = sphi 0, %s22
      %s24 = sphi 0, %s22
      %s25 = sphi 0, %s24
      %s39 = sphi 0, %s25
      %s43 = sphi 0, %s43
      %s45 = sphi 0, %s43
      %s46 = sphi 0, %s45
      %s60 = sphi 0, %s46
      %s66 = sphi 0, %s68
      %s69 = sphi 0, %s66
      %s70 = sphi 0, %s69
      %s86 = sphi 0, %s70
      %s92 = sphi 0, %s94
      %s95 = sphi 0, %s92
      %s96 = sphi 0, %s95
      %s112 = sphi 0, %s96
      %s118 = sphi 0, %s120
      %s121 = sphi 0, %s118
      %s122 = sphi 0, %s121
      %s138 = sphi 0, %s122
      %s144 = sphi 0, %s146
      %s147 = sphi 0, %s144
      %s148 = sphi 0, %s147
      %s164 = sphi 0, %s148
    $region4: #{tpu_custom_call.1} parent=1 // loop_header_branch
      %17 = sbr.rel (%p15) target = $region8
    $region5: #{tpu_custom_call.1} parent=1 // loop_body
      %s19 = ssub.s32 %s14, 1
      %s20 = ssub.s32 %s14, 2
      %s21 = sadd.s32 %s14, 1
      %s23 = sadd.s32 %s22, 1
      %p26 = scmp.eq.s32.totalorder %s14, 1
      %p27 = scmp.ne.s32.totalorder %s22, %s24
      %p28 = scmp.eq.s32.totalorder %s14, 0
      %p29 = por %p27, %p28
      %p30 = scmp.ne.s32.totalorder %s22, %s24
      %p31 = scmp.eq.s32.totalorder %s19, 1
      %p32 = por %p30, %p31
      %p33 = scmp.ne.s32.totalorder %s24, %s25
      %p34 = scmp.eq.s32.totalorder %s19, 0
      %p35 = por %p33, %p34
      %p36 = scmp.ne.s32.totalorder %s24, %s25
      %p37 = scmp.eq.s32.totalorder %s20, 1
      %p38 = por %p36, %p37
      %p40 = scmp.ne.s32.totalorder %s25, %s39
      %p41 = scmp.eq.s32.totalorder %s20, 0
      %p42 = por %p40, %p41
      %s44 = sadd.s32 %s43, 1
      %p47 = scmp.eq.s32.totalorder %s14, 1
      %p48 = scmp.ne.s32.totalorder %s43, %s45
      %p49 = scmp.eq.s32.totalorder %s14, 0
      %p50 = por %p48, %p49
      %p51 = scmp.ne.s32.totalorder %s43, %s45
      %p52 = scmp.eq.s32.totalorder %s19, 1
      %p53 = por %p51, %p52
      %p54 = scmp.ne.s32.totalorder %s45, %s46
      %p55 = scmp.eq.s32.totalorder %s19, 0
      %p56 = por %p54, %p55
      %p57 = scmp.ne.s32.totalorder %s45, %s46
      %p58 = scmp.eq.s32.totalorder %s20, 1
      %p59 = por %p57, %p58
      %p61 = scmp.ne.s32.totalorder %s46, %s60
      %p62 = scmp.eq.s32.totalorder %s20, 0
      %p63 = por %p61, %p62
      %s64 = ssub.s32 %s14, %s21
      %p65 = scmp.eq.s32.totalorder %s64, 0
      %s67 = sadd.s32 %s66, 1
      %s68 = scalar_select %p65, %s66, %s67
      %p71 = pneg %p65
      %p72 = scmp.eq.s32.totalorder %s14, 1
      %p73 = por %p71, %p72
      %p74 = scmp.ne.s32.totalorder %s66, %s69
      %p75 = scmp.eq.s32.totalorder %s14, 0
      %p76 = por %p74, %p75
      %p77 = scmp.ne.s32.totalorder %s66, %s69
      %p78 = scmp.eq.s32.totalorder %s19, 1
      %p79 = por %p77, %p78
      %p80 = scmp.ne.s32.totalorder %s69, %s70
      %p81 = scmp.eq.s32.totalorder %s19, 0
      %p82 = por %p80, %p81
      %p83 = scmp.ne.s32.totalorder %s69, %s70
      %p84 = scmp.eq.s32.totalorder %s20, 1
      %p85 = por %p83, %p84
      %p87 = scmp.ne.s32.totalorder %s70, %s86
      %p88 = scmp.eq.s32.totalorder %s20, 0
      %p89 = por %p87, %p88
      %s90 = ssub.s32 %s14, %s21
      %p91 = scmp.eq.s32.totalorder %s90, 0
      %s93 = sadd.s32 %s92, 1
      %s94 = scalar_select %p91, %s92, %s93
      %p97 = pneg %p91
      %p98 = scmp.eq.s32.totalorder %s14, 1
      %p99 = por %p97, %p98
      %p100 = scmp.ne.s32.totalorder %s92, %s95
      %p101 = scmp.eq.s32.totalorder %s14, 0
      %p102 = por %p100, %p101
      %p103 = scmp.ne.s32.totalorder %s92, %s95
      %p104 = scmp.eq.s32.totalorder %s19, 1
      %p105 = por %p103, %p104
      %p106 = scmp.ne.s32.totalorder %s95, %s96
      %p107 = scmp.eq.s32.totalorder %s19, 0
      %p108 = por %p106, %p107
      %p109 = scmp.ne.s32.totalorder %s95, %s96
      %p110 = scmp.eq.s32.totalorder %s20, 1
      %p111 = por %p109, %p110
      %p113 = scmp.ne.s32.totalorder %s96, %s112
      %p114 = scmp.eq.s32.totalorder %s20, 0
      %p115 = por %p113, %p114
      %s116 = ssub.s32 %s14, %s21
      %p117 = scmp.eq.s32.totalorder %s116, 0
      %s119 = sadd.s32 %s118, 1
      %s120 = scalar_select %p117, %s118, %s119
      %p123 = pneg %p117
      %p124 = scmp.eq.s32.totalorder %s14, 1
      %p125 = por %p123, %p124
      %p126 = scmp.ne.s32.totalorder %s118, %s121
      %p127 = scmp.eq.s32.totalorder %s14, 0
      %p128 = por %p126, %p127
      %p129 = scmp.ne.s32.totalorder %s118, %s121
      %p130 = scmp.eq.s32.totalorder %s19, 1
      %p131 = por %p129, %p130
      %p132 = scmp.ne.s32.totalorder %s121, %s122
      %p133 = scmp.eq.s32.totalorder %s19, 0
      %p134 = por %p132, %p133
      %p135 = scmp.ne.s32.totalorder %s121, %s122
      %p136 = scmp.eq.s32.totalorder %s20, 1
      %p137 = por %p135, %p136
      %p139 = scmp.ne.s32.totalorder %s122, %s138
      %p140 = scmp.eq.s32.totalorder %s20, 0
      %p141 = por %p139, %p140
      %s142 = ssub.s32 %s14, %s21
      %p143 = scmp.eq.s32.totalorder %s142, 0
      %s145 = sadd.s32 %s144, 1
      %s146 = scalar_select %p143, %s144, %s145
      %p149 = pneg %p143
      %p150 = scmp.eq.s32.totalorder %s14, 1
      %p151 = por %p149, %p150
      %p152 = scmp.ne.s32.totalorder %s144, %s147
      %p153 = scmp.eq.s32.totalorder %s14, 0
      %p154 = por %p152, %p153
      %p155 = scmp.ne.s32.totalorder %s144, %s147
      %p156 = scmp.eq.s32.totalorder %s19, 1
      %p157 = por %p155, %p156
      %p158 = scmp.ne.s32.totalorder %s147, %s148
      %p159 = scmp.eq.s32.totalorder %s19, 0
      %p160 = por %p158, %p159
      %p161 = scmp.ne.s32.totalorder %s147, %s148
      %p162 = scmp.eq.s32.totalorder %s20, 1
      %p163 = por %p161, %p162
      %p165 = scmp.ne.s32.totalorder %s148, %s164
      %p166 = scmp.eq.s32.totalorder %s20, 0
      %p167 = por %p165, %p166
      %p168 = scmp.le.s32.totalorder 1, %s14
      %p169 = scmp.lt.s32.totalorder %s14, 3
      %p170 = pnand %p168, %p169
      %p171 = pneg %p170
      // Predicated region
      $region9: #{tpu_custom_call.1} parent=5 // pred_check
        _
      $region10: #{tpu_custom_call.1} parent=5 // pred_check_branch
        %173 = sbr.rel (%p170) target = $region12
      $region11: #{tpu_custom_call.1} parent=5 // pred_region
        %s174 = ssub.s32 %s14, 1
        // Predicated region
        $region13: #{tpu_custom_call.1} parent=11 // pred_check
          %p175 = pneg %p35
        $region14: #{tpu_custom_call.1} parent=11 // pred_check_branch
          %177 = sbr.rel (%p175) target = $region16
        $region15: #{tpu_custom_call.1} parent=11 // pred_region
          _
        $region16: #{tpu_custom_call.1} parent=11 // pred_fallthru
          _
        // Predicated region
        $region17: #{tpu_custom_call.1} parent=11 // pred_check
          %p178 = pneg %p56
        $region18: #{tpu_custom_call.1} parent=11 // pred_check_branch
          %180 = sbr.rel (%p178) target = $region20
        $region19: #{tpu_custom_call.1} parent=11 // pred_region
          _
        $region20: #{tpu_custom_call.1} parent=11 // pred_fallthru
          _
      $region12: #{tpu_custom_call.1} parent=5 // pred_fallthru
        _
      %p181 = scmp.lt.s32.totalorder %s14, 2
      // Predicated region
      $region21: #{tpu_custom_call.1} parent=5 // pred_check
        %p182 = pneg %p181
      $region22: #{tpu_custom_call.1} parent=5 // pred_check_branch
        %184 = sbr.rel (%p182) target = $region24
      $region23: #{tpu_custom_call.1} parent=5 // pred_region
        // Predicated region
        $region25: #{tpu_custom_call.1} parent=23 // pred_check
          %p185 = pneg %p76
        $region26: #{tpu_custom_call.1} parent=23 // pred_check_branch
          %187 = sbr.rel (%p185) target = $region28
        $region27: #{tpu_custom_call.1} parent=23 // pred_region
          %s188 = smul.u32 11, %s14
          %p189 = scmp.lt.s32.totalorder %s188, 21
          %s190 = scalar_select %p189, %s188, 21
          %s191 = smul.addr %s190, 9
          %s192 = smul.addr %s191, 8
          %s193 = scalar_lea.vmem %s2, %s192
          %s194 = smul.u32 11, %s14
        $region28: #{tpu_custom_call.1} parent=23 // pred_fallthru
          _
        // Predicated region
        $region29: #{tpu_custom_call.1} parent=23 // pred_check
          %p195 = pneg %p102
        $region30: #{tpu_custom_call.1} parent=23 // pred_check_branch
          %197 = sbr.rel (%p195) target = $region32
        $region31: #{tpu_custom_call.1} parent=23 // pred_region
          %s198 = smul.u32 11, %s14
          %p199 = scmp.lt.s32.totalorder %s198, 21
          %s200 = scalar_select %p199, %s198, 21
          %s201 = smul.addr %s200, 8
          %s202 = scalar_lea.vmem %s3, %s201
          %s203 = smul.u32 11, %s14
        $region32: #{tpu_custom_call.1} parent=23 // pred_fallthru
          _
        // Predicated region
        $region33: #{tpu_custom_call.1} parent=23 // pred_check
          %p204 = pneg %p128
        $region34: #{tpu_custom_call.1} parent=23 // pred_check_branch
          %206 = sbr.rel (%p204) target = $region36
        $region35: #{tpu_custom_call.1} parent=23 // pred_region
          %s207 = smul.u32 11, %s14
          %p208 = scmp.lt.s32.totalorder %s207, 21
          %s209 = scalar_select %p208, %s207, 21
          %s210 = smul.addr %s209, 8
          %s211 = scalar_lea.vmem %s4, %s210
          %s212 = smul.u32 11, %s14
        $region36: #{tpu_custom_call.1} parent=23 // pred_fallthru
          _
      $region24: #{tpu_custom_call.1} parent=5 // pred_fallthru
        _
      %p213 = scmp.le.s32.totalorder 1, %s14
      %p214 = scmp.lt.s32.totalorder %s14, 3
      %p215 = pnand %p213, %p214
      %p216 = pneg %p215
      // Predicated region
      $region37: #{tpu_custom_call.1} parent=5 // pred_check
        _
      $region38: #{tpu_custom_call.1} parent=5 // pred_check_branch
        %218 = sbr.rel (%p215) target = $region40
      $region39: #{tpu_custom_call.1} parent=5 // pred_region
        %s219 = ssub.s32 %s14, 1
        %p220 = pneg %p35
        %p221 = pneg %p32
        %p222 = pneg %p56
        %p223 = pneg %p53
        %s224 = smul.u32 11, %s19
        %p225 = scmp.lt.s32.totalorder %s224, 21
        %s226 = scalar_select %p225, %s224, 21
        %s227 = smul.addr %s226, 9
        %s228 = smul.addr %s227, 8
        %s229 = scalar_lea.vmem %s2, %s228
        %p230 = pneg %p82
        %p231 = pneg %p79
        %s232 = smul.u32 11, %s19
        %p233 = scmp.lt.s32.totalorder %s232, 21
        %s234 = scalar_select %p233, %s232, 21
        %s235 = smul.addr %s234, 8
        %s236 = scalar_lea.vmem %s3, %s235
        %p237 = pneg %p108
        %p238 = pneg %p105
        %s239 = smul.u32 11, %s19
        %p240 = scmp.lt.s32.totalorder %s239, 21
        %s241 = scalar_select %p240, %s239, 21
        %s242 = smul.addr %s241, 8
        %s243 = scalar_lea.vmem %s4, %s242
        %p244 = pneg %p134
        %p245 = pneg %p131
        %p246 = pneg %p160
        %p247 = pneg %p157
        %s248 = sand.u32 %s147, 1
        %s249 = scalar_lea.sflag [#allocation3], %s248
        %s250 = sand.u32 %s147, 1
        %s251 = smul.addr %s250, 176
        %s252 = scalar_lea.vmem [#allocation2], %s251
        %s253 = smul.u32 11, %s19
        %p254 = scmp.lt.s32.totalorder %s253, 21
        %s255 = scalar_select %p254, %s253, 21
        %s256 = smul.addr %s255, 9
        %s257 = smul.addr %s256, 8
        %s258 = scalar_lea.vmem %s2, %s257
        %s259 = smul.u32 11, %s19
        %s260 = smul.u32 11, %s19
        %p261 = scmp.lt.s32.totalorder %s260, 21
        %s262 = scalar_select %p261, %s260, 21
        %s263 = smul.addr %s262, 8
        %s264 = scalar_lea.vmem %s3, %s263
        %s265 = smul.u32 11, %s19
        %s266 = smul.u32 11, %s19
        %p267 = scmp.lt.s32.totalorder %s266, 21
        %s268 = scalar_select %p267, %s266, 21
        %s269 = smul.addr %s268, 8
        %s270 = scalar_lea.vmem %s4, %s269
        %s271 = smul.u32 11, %s19
        %s272 = smul.u32 11, %s19
        %v273 = vld [vmem:[%s0] sm:$0xff]
        %v274 = vld [vmem:[%s0 + $0x8] sm:$0x1]
        %v275 = vxor.u32 %v273, 2147483648
        %v276 = vxor.u32 %v274, 2147483648
        %v277 = vmul.f32 %v275, 1.442695
        %v278 = vpow.pop %v277
        %v279 = vmul.f32 %v276, 1.442695
        %v280 = vpow.pop %v279
        %v281 = vadd.f32 %v278, 1.0
        %v282 = vadd.f32 %v280, 1.0
        %v283 = vrcp.pop %v281
        %v284 = vmul.f32 %v281, %v283
        %v285 = vsub.f32 1.0, %v284
        %v286 = vmul.f32 %v283, %v285
        %v287 = vadd.f32 %v283, %v286
        %vm288 = vweird.f32 %v281
        %vm289 = vweird.f32 %v283
        %vm290 = vmor %vm288, %vm289
        %v291 = vsel %vm290, %v283, %v287
        %v292 = vand.u32 2147483647, %v281
        %vm293 = vcmp.eq.f32.partialorder %v292, 8.507059e+37
        %v294 = vand.u32 %v281, 2147483648
        %v295 = vor.u32 1.1754944e-38, %v294
        %v296 = vsel %vm293, %v295, %v291
        %v297 = vmul.f32 1.0, %v296
        %v298 = vrcp.pop %v282
        %v299 = vmul.f32 %v282, %v298
        %v300 = vsub.f32 1.0, %v299
        %v301 = vmul.f32 %v298, %v300
        %v302 = vadd.f32 %v298, %v301
        %vm303 = vweird.f32 %v282
        %vm304 = vweird.f32 %v298
        %vm305 = vmor %vm303, %vm304
        %v306 = vsel %vm305, %v298, %v302
        %v307 = vand.u32 2147483647, %v282
        %vm308 = vcmp.eq.f32.partialorder %v307, 8.507059e+37
        %v309 = vand.u32 %v282, 2147483648
        %v310 = vor.u32 1.1754944e-38, %v309
        %v311 = vsel %vm308, %v310, %v306
        %v312 = vmul.f32 1.0, %v311
        %v313 = vld [vmem:[%s258] sm:$0xff]
        %v314 = vld [vmem:[%s258 + $0x8] sm:$0xff]
        %v315 = vld [vmem:[%s258 + $0x10] sm:$0xff]
        %v316 = vld [vmem:[%s258 + $0x18] sm:$0xff]
        %v317 = vld [vmem:[%s258 + $0x20] sm:$0xff]
        %v318 = vld [vmem:[%s258 + $0x28] sm:$0xff]
        %v319 = vld [vmem:[%s258 + $0x30] sm:$0xff]
        %v320 = vld [vmem:[%s258 + $0x38] sm:$0xff]
        %v321 = vld [vmem:[%s258 + $0x40] sm:$0xff]
        %v322 = vld [vmem:[%s258 + $0x48] sm:$0xff]
        %v323 = vld [vmem:[%s258 + $0x50] sm:$0xff]
        %v324 = vld [vmem:[%s258 + $0x58] sm:$0xff]
        %v325 = vld [vmem:[%s258 + $0x60] sm:$0xff]
        %v326 = vld [vmem:[%s258 + $0x68] sm:$0xff]
        %v327 = vld [vmem:[%s258 + $0x70] sm:$0xff]
        %v328 = vld [vmem:[%s258 + $0x78] sm:$0xff]
        %v329 = vld [vmem:[%s258 + $0x80] sm:$0xff]
        %v330 = vld [vmem:[%s258 + $0x88] sm:$0xff]
        %v331 = vld [vmem:[%s258 + $0x90] sm:$0xff]
        %v332 = vld [vmem:[%s258 + $0x98] sm:$0xff]
        %v333 = vld [vmem:[%s258 + $0xa0] sm:$0xff]
        %v334 = vld [vmem:[%s258 + $0xa8] sm:$0xff]
        %v335 = vld [vmem:[%s258 + $0xb0] sm:$0xff]
        %v336 = vld [vmem:[%s258 + $0xb8] sm:$0xff]
        %v337 = vld [vmem:[%s258 + $0xc0] sm:$0xff]
        %v338 = vld [vmem:[%s258 + $0xc8] sm:$0xff]
        %v339 = vld [vmem:[%s258 + $0xd0] sm:$0xff]
        %v340 = vld [vmem:[%s258 + $0xd8] sm:$0xff]
        %v341 = vld [vmem:[%s258 + $0xe0] sm:$0xff]
        %v342 = vld [vmem:[%s258 + $0xe8] sm:$0xff]
        %v343 = vld [vmem:[%s258 + $0xf0] sm:$0xff]
        %v344 = vld [vmem:[%s258 + $0xf8] sm:$0xff]
        %v345 = vld [vmem:[%s258 + $0x100] sm:$0xff]
        %v346 = vld [vmem:[%s258 + $0x108] sm:$0xff]
        %v347 = vld [vmem:[%s258 + $0x110] sm:$0xff]
        %v348 = vld [vmem:[%s258 + $0x118] sm:$0xff]
        %v349 = vld [vmem:[%s258 + $0x120] sm:$0xff]
        %v350 = vld [vmem:[%s258 + $0x128] sm:$0xff]
        %v351 = vld [vmem:[%s258 + $0x130] sm:$0xff]
        %v352 = vld [vmem:[%s258 + $0x138] sm:$0xff]
        %v353 = vld [vmem:[%s258 + $0x140] sm:$0xff]
        %v354 = vld [vmem:[%s258 + $0x148] sm:$0xff]
        %v355 = vld [vmem:[%s258 + $0x150] sm:$0xff]
        %v356 = vld [vmem:[%s258 + $0x158] sm:$0xff]
        %v357 = vld [vmem:[%s258 + $0x160] sm:$0xff]
        %v358 = vld [vmem:[%s258 + $0x168] sm:$0xff]
        %v359 = vld [vmem:[%s258 + $0x170] sm:$0xff]
        %v360 = vld [vmem:[%s258 + $0x178] sm:$0xff]
        %v361 = vld [vmem:[%s258 + $0x180] sm:$0xff]
        %v362 = vld [vmem:[%s258 + $0x188] sm:$0xff]
        %v363 = vld [vmem:[%s258 + $0x190] sm:$0xff]
        %v364 = vld [vmem:[%s258 + $0x198] sm:$0xff]
        %v365 = vld [vmem:[%s258 + $0x1a0] sm:$0xff]
        %v366 = vld [vmem:[%s258 + $0x1a8] sm:$0xff]
        %v367 = vld [vmem:[%s258 + $0x1b0] sm:$0xff]
        %v368 = vld [vmem:[%s258 + $0x1b8] sm:$0xff]
        %v369 = vld [vmem:[%s258 + $0x1c0] sm:$0xff]
        %v370 = vld [vmem:[%s258 + $0x1c8] sm:$0xff]
        %v371 = vld [vmem:[%s258 + $0x1d0] sm:$0xff]
        %v372 = vld [vmem:[%s258 + $0x1d8] sm:$0xff]
        %v373 = vld [vmem:[%s258 + $0x1e0] sm:$0xff]
        %v374 = vld [vmem:[%s258 + $0x1e8] sm:$0xff]
        %v375 = vld [vmem:[%s258 + $0x1f0] sm:$0xff]
        %v376 = vld [vmem:[%s258 + $0x1f8] sm:$0xff]
        %v377 = vld [vmem:[%s258 + $0x200] sm:$0xff]
        %v378 = vld [vmem:[%s258 + $0x208] sm:$0xff]
        %v379 = vld [vmem:[%s258 + $0x210] sm:$0xff]
        %v380 = vld [vmem:[%s258 + $0x218] sm:$0xff]
        %v381 = vld [vmem:[%s258 + $0x220] sm:$0xff]
        %v382 = vld [vmem:[%s258 + $0x228] sm:$0xff]
        %v383 = vld [vmem:[%s258 + $0x230] sm:$0xff]
        %v384 = vld [vmem:[%s258 + $0x238] sm:$0xff]
        %v385 = vld [vmem:[%s258 + $0x240] sm:$0xff]
        %v386 = vld [vmem:[%s258 + $0x248] sm:$0xff]
        %v387 = vld [vmem:[%s258 + $0x250] sm:$0xff]
        %v388 = vld [vmem:[%s258 + $0x258] sm:$0xff]
        %v389 = vld [vmem:[%s258 + $0x260] sm:$0xff]
        %v390 = vld [vmem:[%s258 + $0x268] sm:$0xff]
        %v391 = vld [vmem:[%s258 + $0x270] sm:$0xff]
        %v392 = vld [vmem:[%s258 + $0x278] sm:$0xff]
        %v393 = vld [vmem:[%s258 + $0x280] sm:$0xff]
        %v394 = vld [vmem:[%s258 + $0x288] sm:$0xff]
        %v395 = vld [vmem:[%s258 + $0x290] sm:$0xff]
        %v396 = vld [vmem:[%s258 + $0x298] sm:$0xff]
        %v397 = vld [vmem:[%s258 + $0x2a0] sm:$0xff]
        %v398 = vld [vmem:[%s258 + $0x2a8] sm:$0xff]
        %v399 = vld [vmem:[%s258 + $0x2b0] sm:$0xff]
        %v400 = vld [vmem:[%s258 + $0x2b8] sm:$0xff]
        %v401 = vld [vmem:[%s258 + $0x2c0] sm:$0xff]
        %v402 = vld [vmem:[%s258 + $0x2c8] sm:$0xff]
        %v403 = vld [vmem:[%s258 + $0x2d0] sm:$0xff]
        %v404 = vld [vmem:[%s258 + $0x2d8] sm:$0xff]
        %v405 = vld [vmem:[%s258 + $0x2e0] sm:$0xff]
        %v406 = vld [vmem:[%s258 + $0x2e8] sm:$0xff]
        %v407 = vld [vmem:[%s258 + $0x2f0] sm:$0xff]
        %v408 = vld [vmem:[%s258 + $0x2f8] sm:$0xff]
        %v409 = vld [vmem:[%s258 + $0x300] sm:$0xff]
        %v410 = vld [vmem:[%s258 + $0x308] sm:$0xff]
        %v411 = vld [vmem:[%s258 + $0x310] sm:$0xff]
        %v414 = vperm.slane %v297, 0
        %v415 = vperm.slane %v297, 1
        %v416 = vperm.slane %v297, 2
        %v417 = vperm.slane %v297, 3
        %v418 = vperm.slane %v297, 4
        %v419 = vperm.slane %v297, 5
        %v420 = vperm.slane %v297, 6
        %v421 = vperm.slane %v297, 7
        %v422 = vperm.slane %v312, 0
        %v432 = vmul.f32 %v313, %v414
        %v433 = vmul.f32 %v314, %v415
        %v434 = vmul.f32 %v315, %v416
        %v435 = vmul.f32 %v316, %v417
        %v436 = vmul.f32 %v317, %v418
        %v437 = vmul.f32 %v318, %v419
        %v438 = vmul.f32 %v319, %v420
        %v439 = vmul.f32 %v320, %v421
        %v440 = vmul.f32 %v321, %v422
        %v441 = vmul.f32 %v322, %v414
        %v442 = vmul.f32 %v323, %v415
        %v443 = vmul.f32 %v324, %v416
        %v444 = vmul.f32 %v325, %v417
        %v445 = vmul.f32 %v326, %v418
        %v446 = vmul.f32 %v327, %v419
        %v447 = vmul.f32 %v328, %v420
        %v448 = vmul.f32 %v329, %v421
        %v449 = vmul.f32 %v330, %v422
        %v450 = vmul.f32 %v331, %v414
        %v451 = vmul.f32 %v332, %v415
        %v452 = vmul.f32 %v333, %v416
        %v453 = vmul.f32 %v334, %v417
        %v454 = vmul.f32 %v335, %v418
        %v455 = vmul.f32 %v336, %v419
        %v456 = vmul.f32 %v337, %v420
        %v457 = vmul.f32 %v338, %v421
        %v458 = vmul.f32 %v339, %v422
        %v459 = vmul.f32 %v340, %v414
        %v460 = vmul.f32 %v341, %v415
        %v461 = vmul.f32 %v342, %v416
        %v462 = vmul.f32 %v343, %v417
        %v463 = vmul.f32 %v344, %v418
        %v464 = vmul.f32 %v345, %v419
        %v465 = vmul.f32 %v346, %v420
        %v466 = vmul.f32 %v347, %v421
        %v467 = vmul.f32 %v348, %v422
        %v468 = vmul.f32 %v349, %v414
        %v469 = vmul.f32 %v350, %v415
        %v470 = vmul.f32 %v351, %v416
        %v471 = vmul.f32 %v352, %v417
        %v472 = vmul.f32 %v353, %v418
        %v473 = vmul.f32 %v354, %v419
        %v474 = vmul.f32 %v355, %v420
        %v475 = vmul.f32 %v356, %v421
        %v476 = vmul.f32 %v357, %v422
        %v477 = vmul.f32 %v358, %v414
        %v478 = vmul.f32 %v359, %v415
        %v479 = vmul.f32 %v360, %v416
        %v480 = vmul.f32 %v361, %v417
        %v481 = vmul.f32 %v362, %v418
        %v482 = vmul.f32 %v363, %v419
        %v483 = vmul.f32 %v364, %v420
        %v484 = vmul.f32 %v365, %v421
        %v485 = vmul.f32 %v366, %v422
        %v486 = vmul.f32 %v367, %v414
        %v487 = vmul.f32 %v368, %v415
        %v488 = vmul.f32 %v369, %v416
        %v489 = vmul.f32 %v370, %v417
        %v490 = vmul.f32 %v371, %v418
        %v491 = vmul.f32 %v372, %v419
        %v492 = vmul.f32 %v373, %v420
        %v493 = vmul.f32 %v374, %v421
        %v494 = vmul.f32 %v375, %v422
        %v495 = vmul.f32 %v376, %v414
        %v496 = vmul.f32 %v377, %v415
        %v497 = vmul.f32 %v378, %v416
        %v498 = vmul.f32 %v379, %v417
        %v499 = vmul.f32 %v380, %v418
        %v500 = vmul.f32 %v381, %v419
        %v501 = vmul.f32 %v382, %v420
        %v502 = vmul.f32 %v383, %v421
        %v503 = vmul.f32 %v384, %v422
        %v504 = vmul.f32 %v385, %v414
        %v505 = vmul.f32 %v386, %v415
        %v506 = vmul.f32 %v387, %v416
        %v507 = vmul.f32 %v388, %v417
        %v508 = vmul.f32 %v389, %v418
        %v509 = vmul.f32 %v390, %v419
        %v510 = vmul.f32 %v391, %v420
        %v511 = vmul.f32 %v392, %v421
        %v512 = vmul.f32 %v393, %v422
        %v513 = vmul.f32 %v394, %v414
        %v514 = vmul.f32 %v395, %v415
        %v515 = vmul.f32 %v396, %v416
        %v516 = vmul.f32 %v397, %v417
        %v517 = vmul.f32 %v398, %v418
        %v518 = vmul.f32 %v399, %v419
        %v519 = vmul.f32 %v400, %v420
        %v520 = vmul.f32 %v401, %v421
        %v521 = vmul.f32 %v402, %v422
        %v522 = vmul.f32 %v403, %v414
        %v523 = vmul.f32 %v404, %v415
        %v524 = vmul.f32 %v405, %v416
        %v525 = vmul.f32 %v406, %v417
        %v526 = vmul.f32 %v407, %v418
        %v527 = vmul.f32 %v408, %v419
        %v528 = vmul.f32 %v409, %v420
        %v529 = vmul.f32 %v410, %v421
        %v530 = vmul.f32 %v411, %v422
        %v531 = vld [vmem:[%s1] sm:$0xff]
        %v532 = vld [vmem:[%s1 + $0x8] sm:$0xff]
        %v533 = vld [vmem:[%s1 + $0x10] sm:$0xff]
        %v534 = vld [vmem:[%s1 + $0x18] sm:$0xff]
        %v535 = vld [vmem:[%s1 + $0x20] sm:$0xff]
        %v536 = vld [vmem:[%s1 + $0x28] sm:$0xff]
        %v537 = vld [vmem:[%s1 + $0x30] sm:$0xff]
        %v538 = vld [vmem:[%s1 + $0x38] sm:$0xff]
        %v539 = vld [vmem:[%s1 + $0x40] sm:$0xff]
        %v540 = vld [vmem:[%s1 + $0x48] sm:$0xff]
        %v541 = vld [vmem:[%s1 + $0x50] sm:$0xff]
        %v542 = vld [vmem:[%s1 + $0x58] sm:$0xff]
        %v543 = vld [vmem:[%s1 + $0x60] sm:$0xff]
        %v544 = vld [vmem:[%s1 + $0x68] sm:$0xff]
        %v545 = vld [vmem:[%s1 + $0x70] sm:$0xff]
        %v546 = vld [vmem:[%s1 + $0x78] sm:$0xff]
        %v547 = vld [vmem:[%s1 + $0x80] sm:$0xff]
        %v548 = vld [vmem:[%s1 + $0x88] sm:$0xff]
        %v549 = vld [vmem:[%s1 + $0x90] sm:$0xff]
        %v550 = vld [vmem:[%s1 + $0x98] sm:$0xff]
        %v551 = vld [vmem:[%s1 + $0xa0] sm:$0xff]
        %v552 = vld [vmem:[%s1 + $0xa8] sm:$0xff]
        %v553 = vld [vmem:[%s1 + $0xb0] sm:$0xff]
        %v554 = vld [vmem:[%s1 + $0xb8] sm:$0xff]
        %v555 = vld [vmem:[%s1 + $0xc0] sm:$0xff]
        %v556 = vld [vmem:[%s1 + $0xc8] sm:$0xff]
        %v557 = vld [vmem:[%s1 + $0xd0] sm:$0xff]
        %v558 = vld [vmem:[%s1 + $0xd8] sm:$0xff]
        %v559 = vld [vmem:[%s1 + $0xe0] sm:$0xff]
        %v560 = vld [vmem:[%s1 + $0xe8] sm:$0xff]
        %v561 = vld [vmem:[%s1 + $0xf0] sm:$0xff]
        %v562 = vld [vmem:[%s1 + $0xf8] sm:$0xff]
        %v563 = vld [vmem:[%s1 + $0x100] sm:$0xff]
        %v564 = vld [vmem:[%s1 + $0x108] sm:$0xff]
        %v565 = vld [vmem:[%s1 + $0x110] sm:$0xff]
        %v566 = vld [vmem:[%s1 + $0x118] sm:$0xff]
        %v567 = vld [vmem:[%s1 + $0x120] sm:$0xff]
        %v568 = vld [vmem:[%s1 + $0x128] sm:$0xff]
        %v569 = vld [vmem:[%s1 + $0x130] sm:$0xff]
        %v570 = vld [vmem:[%s1 + $0x138] sm:$0xff]
        %v571 = vld [vmem:[%s1 + $0x140] sm:$0xff]
        %v572 = vld [vmem:[%s1 + $0x148] sm:$0xff]
        %v573 = vld [vmem:[%s1 + $0x150] sm:$0xff]
        %v574 = vld [vmem:[%s1 + $0x158] sm:$0xff]
        %v575 = vld [vmem:[%s1 + $0x160] sm:$0xff]
        %v576 = vld [vmem:[%s1 + $0x168] sm:$0xff]
        %v577 = vld [vmem:[%s1 + $0x170] sm:$0xff]
        %v578 = vld [vmem:[%s1 + $0x178] sm:$0xff]
        %v579 = vld [vmem:[%s1 + $0x180] sm:$0xff]
        %v580 = vld [vmem:[%s1 + $0x188] sm:$0xff]
        %v581 = vld [vmem:[%s1 + $0x190] sm:$0xff]
        %v582 = vld [vmem:[%s1 + $0x198] sm:$0xff]
        %v583 = vld [vmem:[%s1 + $0x1a0] sm:$0xff]
        %v584 = vld [vmem:[%s1 + $0x1a8] sm:$0xff]
        %v585 = vld [vmem:[%s1 + $0x1b0] sm:$0xff]
        %v586 = vld [vmem:[%s1 + $0x1b8] sm:$0xff]
        %v587 = vld [vmem:[%s1 + $0x1c0] sm:$0xff]
        %v588 = vld [vmem:[%s1 + $0x1c8] sm:$0xff]
        %v589 = vld [vmem:[%s1 + $0x1d0] sm:$0xff]
        %v590 = vld [vmem:[%s1 + $0x1d8] sm:$0xff]
        %v591 = vld [vmem:[%s1 + $0x1e0] sm:$0xff]
        %v592 = vld [vmem:[%s1 + $0x1e8] sm:$0xff]
        %v593 = vld [vmem:[%s1 + $0x1f0] sm:$0xff]
        %v594 = vld [vmem:[%s1 + $0x1f8] sm:$0xff]
        %v595 = vld [vmem:[%s1 + $0x200] sm:$0xff]
        %v596 = vld [vmem:[%s1 + $0x208] sm:$0xff]
        %v597 = vld [vmem:[%s1 + $0x210] sm:$0xff]
        %v598 = vld [vmem:[%s1 + $0x218] sm:$0xff]
        %v599 = vld [vmem:[%s1 + $0x220] sm:$0xff]
        %v600 = vld [vmem:[%s1 + $0x228] sm:$0xff]
        %v601 = vld [vmem:[%s1 + $0x230] sm:$0xff]
        %v602 = vld [vmem:[%s1 + $0x238] sm:$0xff]
        %v603 = vld [vmem:[%s1 + $0x240] sm:$0xff]
        %v604 = vld [vmem:[%s1 + $0x248] sm:$0xff]
        %v605 = vld [vmem:[%s1 + $0x250] sm:$0xff]
        %v606 = vld [vmem:[%s1 + $0x258] sm:$0xff]
        %v607 = vld [vmem:[%s1 + $0x260] sm:$0xff]
        %v608 = vld [vmem:[%s1 + $0x268] sm:$0xff]
        %v609 = vld [vmem:[%s1 + $0x270] sm:$0xff]
        %v610 = vld [vmem:[%s1 + $0x278] sm:$0xff]
        %v611 = vld [vmem:[%s1 + $0x280] sm:$0xff]
        %v612 = vld [vmem:[%s1 + $0x288] sm:$0xff]
        %v613 = vld [vmem:[%s1 + $0x290] sm:$0xff]
        %v614 = vld [vmem:[%s1 + $0x298] sm:$0xff]
        %v615 = vld [vmem:[%s1 + $0x2a0] sm:$0xff]
        %v616 = vld [vmem:[%s1 + $0x2a8] sm:$0xff]
        %v617 = vld [vmem:[%s1 + $0x2b0] sm:$0xff]
        %v618 = vld [vmem:[%s1 + $0x2b8] sm:$0xff]
        %v619 = vld [vmem:[%s1 + $0x2c0] sm:$0xff]
        %v620 = vld [vmem:[%s1 + $0x2c8] sm:$0xff]
        %v621 = vld [vmem:[%s1 + $0x2d0] sm:$0xff]
        %v622 = vld [vmem:[%s1 + $0x2d8] sm:$0xff]
        %v623 = vld [vmem:[%s1 + $0x2e0] sm:$0xff]
        %v624 = vld [vmem:[%s1 + $0x2e8] sm:$0xff]
        %v625 = vld [vmem:[%s1 + $0x2f0] sm:$0xff]
        %v626 = vld [vmem:[%s1 + $0x2f8] sm:$0xff]
        %v627 = vld [vmem:[%s1 + $0x300] sm:$0xff]
        %v628 = vld [vmem:[%s1 + $0x308] sm:$0xff]
        %v629 = vld [vmem:[%s1 + $0x310] sm:$0xff]
        %v630 = vld [vmem:[%s1 + $0x318] sm:$0xff]
        %v631 = vld [vmem:[%s1 + $0x320] sm:$0xff]
        %v632 = vld [vmem:[%s1 + $0x328] sm:$0xff]
        %v633 = vld [vmem:[%s1 + $0x330] sm:$0xff]
        %v634 = vld [vmem:[%s1 + $0x338] sm:$0xff]
        %v635 = vld [vmem:[%s1 + $0x340] sm:$0xff]
        %v636 = vld [vmem:[%s1 + $0x348] sm:$0xff]
        %v637 = vld [vmem:[%s1 + $0x350] sm:$0xff]
        %v638 = vld [vmem:[%s1 + $0x358] sm:$0xff]
        %v639 = vld [vmem:[%s1 + $0x360] sm:$0xff]
        %v640 = vld [vmem:[%s1 + $0x368] sm:$0xff]
        %v641 = vld [vmem:[%s1 + $0x370] sm:$0xff]
        %v642 = vld [vmem:[%s1 + $0x378] sm:$0xff]
        %v643 = vld [vmem:[%s1 + $0x380] sm:$0xff]
        %v644 = vld [vmem:[%s1 + $0x388] sm:$0xff]
        %v645 = vld [vmem:[%s1 + $0x390] sm:$0xff]
        %v646 = vld [vmem:[%s1 + $0x398] sm:$0xff]
        %v647 = vld [vmem:[%s1 + $0x3a0] sm:$0xff]
        %v648 = vld [vmem:[%s1 + $0x3a8] sm:$0xff]
        %v649 = vld [vmem:[%s1 + $0x3b0] sm:$0xff]
        %v650 = vld [vmem:[%s1 + $0x3b8] sm:$0xff]
        %v651 = vld [vmem:[%s1 + $0x3c0] sm:$0xff]
        %v652 = vld [vmem:[%s1 + $0x3c8] sm:$0xff]
        %v653 = vld [vmem:[%s1 + $0x3d0] sm:$0xff]
        %v654 = vld [vmem:[%s1 + $0x3d8] sm:$0xff]
        %v655 = vld [vmem:[%s1 + $0x3e0] sm:$0xff]
        %v656 = vld [vmem:[%s1 + $0x3e8] sm:$0xff]
        %v657 = vld [vmem:[%s1 + $0x3f0] sm:$0xff]
        %v658 = vld [vmem:[%s1 + $0x3f8] sm:$0xff]
        %v659 = vld [vmem:[%s1 + $0x400] sm:$0xff]
        %v660 = vld [vmem:[%s1 + $0x408] sm:$0xff]
        %v661 = vld [vmem:[%s1 + $0x410] sm:$0xff]
        %v662 = vld [vmem:[%s1 + $0x418] sm:$0xff]
        %v663 = vld [vmem:[%s1 + $0x420] sm:$0xff]
        %v664 = vld [vmem:[%s1 + $0x428] sm:$0xff]
        %v665 = vld [vmem:[%s1 + $0x430] sm:$0xff]
        %v666 = vld [vmem:[%s1 + $0x438] sm:$0xff]
        %v667 = vld [vmem:[%s1 + $0x440] sm:$0xff]
        %v668 = vld [vmem:[%s1 + $0x448] sm:$0xff]
        %v669 = vld [vmem:[%s1 + $0x450] sm:$0xff]
        %v670 = vld [vmem:[%s1 + $0x458] sm:$0xff]
        %v671 = vld [vmem:[%s1 + $0x460] sm:$0xff]
        %v672 = vld [vmem:[%s1 + $0x468] sm:$0xff]
        %v673 = vld [vmem:[%s1 + $0x470] sm:$0xff]
        %v674 = vld [vmem:[%s1 + $0x478] sm:$0xff]
        %v675 = vld [vmem:[%s1 + $0x480] sm:$0xff]
        %v676 = vld [vmem:[%s1 + $0x488] sm:$0xff]
        %v677 = vld [vmem:[%s1 + $0x490] sm:$0xff]
        %v678 = vld [vmem:[%s1 + $0x498] sm:$0xff]
        %v679 = vld [vmem:[%s1 + $0x4a0] sm:$0xff]
        %v680 = vld [vmem:[%s1 + $0x4a8] sm:$0xff]
        %v681 = vld [vmem:[%s1 + $0x4b0] sm:$0xff]
        %v682 = vld [vmem:[%s1 + $0x4b8] sm:$0xff]
        %v683 = vld [vmem:[%s1 + $0x4c0] sm:$0xff]
        %v684 = vld [vmem:[%s1 + $0x4c8] sm:$0xff]
        %v685 = vld [vmem:[%s1 + $0x4d0] sm:$0xff]
        %v686 = vld [vmem:[%s1 + $0x4d8] sm:$0xff]
        %v687 = vld [vmem:[%s1 + $0x4e0] sm:$0xff]
        %v688 = vld [vmem:[%s1 + $0x4e8] sm:$0xff]
        %v689 = vld [vmem:[%s1 + $0x4f0] sm:$0xff]
        %v690 = vld [vmem:[%s1 + $0x4f8] sm:$0xff]
        %v691 = vld [vmem:[%s1 + $0x500] sm:$0xff]
        %v692 = vld [vmem:[%s1 + $0x508] sm:$0xff]
        %v693 = vld [vmem:[%s1 + $0x510] sm:$0xff]
        %v694 = vld [vmem:[%s1 + $0x518] sm:$0xff]
        %v695 = vld [vmem:[%s1 + $0x520] sm:$0xff]
        %v696 = vld [vmem:[%s1 + $0x528] sm:$0xff]
        %v697 = vld [vmem:[%s1 + $0x530] sm:$0xff]
        %v698 = vld [vmem:[%s1 + $0x538] sm:$0xff]
        %v699 = vld [vmem:[%s1 + $0x540] sm:$0xff]
        %v700 = vld [vmem:[%s1 + $0x548] sm:$0xff]
        %v701 = vld [vmem:[%s1 + $0x550] sm:$0xff]
        %v702 = vld [vmem:[%s1 + $0x558] sm:$0xff]
        %v703 = vld [vmem:[%s1 + $0x560] sm:$0xff]
        %v704 = vld [vmem:[%s1 + $0x568] sm:$0xff]
        %v705 = vld [vmem:[%s1 + $0x570] sm:$0xff]
        %v706 = vld [vmem:[%s1 + $0x578] sm:$0xff]
        %v707 = vld [vmem:[%s1 + $0x580] sm:$0xff]
        %v708 = vld [vmem:[%s1 + $0x588] sm:$0xff]
        %v709 = vld [vmem:[%s1 + $0x590] sm:$0xff]
        %v710 = vld [vmem:[%s1 + $0x598] sm:$0xff]
        %v711 = vld [vmem:[%s1 + $0x5a0] sm:$0xff]
        %v712 = vld [vmem:[%s1 + $0x5a8] sm:$0xff]
        %v713 = vld [vmem:[%s1 + $0x5b0] sm:$0xff]
        %v714 = vld [vmem:[%s1 + $0x5b8] sm:$0xff]
        %v715 = vld [vmem:[%s1 + $0x5c0] sm:$0xff]
        %v716 = vld [vmem:[%s1 + $0x5c8] sm:$0xff]
        %v717 = vld [vmem:[%s1 + $0x5d0] sm:$0xff]
        %v718 = vld [vmem:[%s1 + $0x5d8] sm:$0xff]
        %v719 = vld [vmem:[%s1 + $0x5e0] sm:$0xff]
        %v720 = vld [vmem:[%s1 + $0x5e8] sm:$0xff]
        %v721 = vld [vmem:[%s1 + $0x5f0] sm:$0xff]
        %v722 = vld [vmem:[%s1 + $0x5f8] sm:$0xff]
        %v723 = vld [vmem:[%s1 + $0x600] sm:$0xff]
        %v724 = vld [vmem:[%s1 + $0x608] sm:$0xff]
        %v725 = vld [vmem:[%s1 + $0x610] sm:$0xff]
        %v726 = vld [vmem:[%s1 + $0x618] sm:$0xff]
        %v727 = vld [vmem:[%s1 + $0x620] sm:$0xff]
        %v728 = vld [vmem:[%s1 + $0x628] sm:$0xff]
        %v729 = vld [vmem:[%s1 + $0x630] sm:$0xff]
        %v730 = vld [vmem:[%s1 + $0x638] sm:$0xff]
        %v731 = vld [vmem:[%s1 + $0x640] sm:$0xff]
        %v732 = vld [vmem:[%s1 + $0x648] sm:$0xff]
        %v733 = vld [vmem:[%s1 + $0x650] sm:$0xff]
        %v734 = vld [vmem:[%s1 + $0x658] sm:$0xff]
        %v735 = vld [vmem:[%s1 + $0x660] sm:$0xff]
        %v736 = vld [vmem:[%s1 + $0x668] sm:$0xff]
        %v737 = vld [vmem:[%s1 + $0x670] sm:$0xff]
        %v738 = vld [vmem:[%s1 + $0x678] sm:$0xff]
        %v739 = vld [vmem:[%s1 + $0x680] sm:$0xff]
        %v740 = vld [vmem:[%s1 + $0x688] sm:$0xff]
        %v741 = vld [vmem:[%s1 + $0x690] sm:$0xff]
        %v742 = vld [vmem:[%s1 + $0x698] sm:$0xff]
        %v743 = vld [vmem:[%s1 + $0x6a0] sm:$0xff]
        %v744 = vld [vmem:[%s1 + $0x6a8] sm:$0xff]
        %v745 = vld [vmem:[%s1 + $0x6b0] sm:$0xff]
        %v746 = vld [vmem:[%s1 + $0x6b8] sm:$0xff]
        %v747 = vld [vmem:[%s1 + $0x6c0] sm:$0xff]
        %v748 = vld [vmem:[%s1 + $0x6c8] sm:$0xff]
        %v749 = vld [vmem:[%s1 + $0x6d0] sm:$0xff]
        %v750 = vld [vmem:[%s1 + $0x6d8] sm:$0xff]
        %v751 = vld [vmem:[%s1 + $0x6e0] sm:$0xff]
        %v752 = vld [vmem:[%s1 + $0x6e8] sm:$0xff]
        %v753 = vld [vmem:[%s1 + $0x6f0] sm:$0xff]
        %v754 = vld [vmem:[%s1 + $0x6f8] sm:$0xff]
        %v755 = vld [vmem:[%s1 + $0x700] sm:$0xff]
        %v756 = vld [vmem:[%s1 + $0x708] sm:$0xff]
        %v757 = vld [vmem:[%s1 + $0x710] sm:$0xff]
        %v758 = vld [vmem:[%s1 + $0x718] sm:$0xff]
        %v759 = vld [vmem:[%s1 + $0x720] sm:$0xff]
        %v760 = vld [vmem:[%s1 + $0x728] sm:$0xff]
        %v761 = vld [vmem:[%s1 + $0x730] sm:$0xff]
        %v762 = vld [vmem:[%s1 + $0x738] sm:$0xff]
        %v763 = vld [vmem:[%s1 + $0x740] sm:$0xff]
        %v764 = vld [vmem:[%s1 + $0x748] sm:$0xff]
        %v765 = vld [vmem:[%s1 + $0x750] sm:$0xff]
        %v766 = vld [vmem:[%s1 + $0x758] sm:$0xff]
        %v767 = vld [vmem:[%s1 + $0x760] sm:$0xff]
        %v768 = vld [vmem:[%s1 + $0x768] sm:$0xff]
        %v769 = vld [vmem:[%s1 + $0x770] sm:$0xff]
        %v770 = vld [vmem:[%s1 + $0x778] sm:$0xff]
        %v771 = vld [vmem:[%s1 + $0x780] sm:$0xff]
        %v772 = vld [vmem:[%s1 + $0x788] sm:$0xff]
        %v773 = vld [vmem:[%s1 + $0x790] sm:$0xff]
        %v774 = vld [vmem:[%s1 + $0x798] sm:$0xff]
        %v775 = vld [vmem:[%s1 + $0x7a0] sm:$0xff]
        %v776 = vld [vmem:[%s1 + $0x7a8] sm:$0xff]
        %v777 = vld [vmem:[%s1 + $0x7b0] sm:$0xff]
        %v778 = vld [vmem:[%s1 + $0x7b8] sm:$0xff]
        %v779 = vld [vmem:[%s1 + $0x7c0] sm:$0xff]
        %v780 = vld [vmem:[%s1 + $0x7c8] sm:$0xff]
        %v781 = vld [vmem:[%s1 + $0x7d0] sm:$0xff]
        %v782 = vld [vmem:[%s1 + $0x7d8] sm:$0xff]
        %v783 = vld [vmem:[%s1 + $0x7e0] sm:$0xff]
        %v784 = vld [vmem:[%s1 + $0x7e8] sm:$0xff]
        %v785 = vld [vmem:[%s1 + $0x7f0] sm:$0xff]
        %v786 = vld [vmem:[%s1 + $0x7f8] sm:$0xff]
        %v787 = vld [vmem:[%s1 + $0x800] sm:$0xff]
        %v788 = vld [vmem:[%s1 + $0x808] sm:$0xff]
        %v789 = vld [vmem:[%s1 + $0x810] sm:$0xff]
        %v790 = vld [vmem:[%s1 + $0x818] sm:$0xff]
        %v791 = vld [vmem:[%s1 + $0x820] sm:$0xff]
        %v792 = vld [vmem:[%s1 + $0x828] sm:$0xff]
        %v793 = vld [vmem:[%s1 + $0x830] sm:$0xff]
        %v794 = vld [vmem:[%s1 + $0x838] sm:$0xff]
        %vm795 = vcmask 261120
        %v797 = vsel %vm795, %v440, 0
        %v800 = vsel %vm795, %v449, 0
        %v803 = vsel %vm795, %v458, 0
        %v806 = vsel %vm795, %v467, 0
        %v809 = vsel %vm795, %v476, 0
        %v812 = vsel %vm795, %v485, 0
        %v815 = vsel %vm795, %v494, 0
        %v818 = vsel %vm795, %v503, 0
        %v821 = vsel %vm795, %v512, 0
        %v824 = vsel %vm795, %v521, 0
        %v827 = vsel %vm795, %v530, 0
        %829 = vmatpush.msra.mxu0 %v561
        %830 = vmatpush.msra.mxu0 %v559
        %831 = vmatpush.msra.mxu0 %v557
        %832 = vmatpush.msra.mxu0 %v555
        %833 = vmatpush.msra.mxu0 %v553
        %834 = vmatpush.msra.mxu0 %v551
        %835 = vmatpush.msra.mxu0 %v549
        %836 = vmatpush.msra.mxu0 %v547
        %837 = vmatpush.msra.mxu0 %v545
        %838 = vmatpush.msra.mxu0 %v543
        %839 = vmatpush.msra.mxu0 %v541
        %840 = vmatpush.msra.mxu0 %v539
        %841 = vmatpush.msra.mxu0 %v537
        %842 = vmatpush.msra.mxu0 %v535
        %843 = vmatpush.msra.mxu0 %v533
        %844 = vmatpush.msra.mxu0 %v531
        %845 = vmatmul.f32.gmra.mxu0 %v432
        %v846 = vpop.f32.mrf.mxu0
        %v847 = vadd.f32 0.0, %v846
        %848 = vmatmul.f32.gmra.mxu0 %v441
        %v849 = vpop.f32.mrf.mxu0
        %v850 = vadd.f32 0.0, %v849
        %851 = vmatmul.f32.gmra.mxu0 %v450
        %v852 = vpop.f32.mrf.mxu0
        %v853 = vadd.f32 0.0, %v852
        %854 = vmatmul.f32.gmra.mxu0 %v459
        %v855 = vpop.f32.mrf.mxu0
        %v856 = vadd.f32 0.0, %v855
        %857 = vmatmul.f32.gmra.mxu0 %v468
        %v858 = vpop.f32.mrf.mxu0
        %v859 = vadd.f32 0.0, %v858
        %860 = vmatmul.f32.gmra.mxu0 %v477
        %v861 = vpop.f32.mrf.mxu0
        %v862 = vadd.f32 0.0, %v861
        %863 = vmatmul.f32.gmra.mxu0 %v486
        %v864 = vpop.f32.mrf.mxu0
        %v865 = vadd.f32 0.0, %v864
        %866 = vmatmul.f32.gmra.mxu0 %v495
        %v867 = vpop.f32.mrf.mxu0
        %v868 = vadd.f32 0.0, %v867
        %869 = vmatmul.f32.gmra.mxu0 %v504
        %v870 = vpop.f32.mrf.mxu0
        %v871 = vadd.f32 0.0, %v870
        %872 = vmatmul.f32.gmra.mxu0 %v513
        %v873 = vpop.f32.mrf.mxu0
        %v874 = vadd.f32 0.0, %v873
        %875 = vmatmul.f32.gmra.mxu0 %v522
        %v876 = vpop.f32.mrf.mxu0
        %v877 = vadd.f32 0.0, %v876
        %878 = vdwg.mxu0
        %879 = vmatpush.msra.mxu0 %v593
        %880 = vmatpush.msra.mxu0 %v591
        %881 = vmatpush.msra.mxu0 %v589
        %882 = vmatpush.msra.mxu0 %v587
        %883 = vmatpush.msra.mxu0 %v585
        %884 = vmatpush.msra.mxu0 %v583
        %885 = vmatpush.msra.mxu0 %v581
        %886 = vmatpush.msra.mxu0 %v579
        %887 = vmatpush.msra.mxu0 %v577
        %888 = vmatpush.msra.mxu0 %v575
        %889 = vmatpush.msra.mxu0 %v573
        %890 = vmatpush.msra.mxu0 %v571
        %891 = vmatpush.msra.mxu0 %v569
        %892 = vmatpush.msra.mxu0 %v567
        %893 = vmatpush.msra.mxu0 %v565
        %894 = vmatpush.msra.mxu0 %v563
        %895 = vmatmul.f32.gmra.mxu0 %v433
        %v896 = vpop.f32.mrf.mxu0
        %v897 = vadd.f32 %v847, %v896
        %898 = vmatmul.f32.gmra.mxu0 %v442
        %v899 = vpop.f32.mrf.mxu0
        %v900 = vadd.f32 %v850, %v899
        %901 = vmatmul.f32.gmra.mxu0 %v451
        %v902 = vpop.f32.mrf.mxu0
        %v903 = vadd.f32 %v853, %v902
        %904 = vmatmul.f32.gmra.mxu0 %v460
        %v905 = vpop.f32.mrf.mxu0
        %v906 = vadd.f32 %v856, %v905
        %907 = vmatmul.f32.gmra.mxu0 %v469
        %v908 = vpop.f32.mrf.mxu0
        %v909 = vadd.f32 %v859, %v908
        %910 = vmatmul.f32.gmra.mxu0 %v478
        %v911 = vpop.f32.mrf.mxu0
        %v912 = vadd.f32 %v862, %v911
        %913 = vmatmul.f32.gmra.mxu0 %v487
        %v914 = vpop.f32.mrf.mxu0
        %v915 = vadd.f32 %v865, %v914
        %916 = vmatmul.f32.gmra.mxu0 %v496
        %v917 = vpop.f32.mrf.mxu0
        %v918 = vadd.f32 %v868, %v917
        %919 = vmatmul.f32.gmra.mxu0 %v505
        %v920 = vpop.f32.mrf.mxu0
        %v921 = vadd.f32 %v871, %v920
        %922 = vmatmul.f32.gmra.mxu0 %v514
        %v923 = vpop.f32.mrf.mxu0
        %v924 = vadd.f32 %v874, %v923
        %925 = vmatmul.f32.gmra.mxu0 %v523
        %v926 = vpop.f32.mrf.mxu0
        %v927 = vadd.f32 %v877, %v926
        %928 = vdwg.mxu0
        %929 = vmatpush.msra.mxu0 %v625
        %930 = vmatpush.msra.mxu0 %v623
        %931 = vmatpush.msra.mxu0 %v621
        %932 = vmatpush.msra.mxu0 %v619
        %933 = vmatpush.msra.mxu0 %v617
        %934 = vmatpush.msra.mxu0 %v615
        %935 = vmatpush.msra.mxu0 %v613
        %936 = vmatpush.msra.mxu0 %v611
        %937 = vmatpush.msra.mxu0 %v609
        %938 = vmatpush.msra.mxu0 %v607
        %939 = vmatpush.msra.mxu0 %v605
        %940 = vmatpush.msra.mxu0 %v603
        %941 = vmatpush.msra.mxu0 %v601
        %942 = vmatpush.msra.mxu0 %v599
        %943 = vmatpush.msra.mxu0 %v597
        %944 = vmatpush.msra.mxu0 %v595
        %945 = vmatmul.f32.gmra.mxu0 %v434
        %v946 = vpop.f32.mrf.mxu0
        %v947 = vadd.f32 %v897, %v946
        %948 = vmatmul.f32.gmra.mxu0 %v443
        %v949 = vpop.f32.mrf.mxu0
        %v950 = vadd.f32 %v900, %v949
        %951 = vmatmul.f32.gmra.mxu0 %v452
        %v952 = vpop.f32.mrf.mxu0
        %v953 = vadd.f32 %v903, %v952
        %954 = vmatmul.f32.gmra.mxu0 %v461
        %v955 = vpop.f32.mrf.mxu0
        %v956 = vadd.f32 %v906, %v955
        %957 = vmatmul.f32.gmra.mxu0 %v470
        %v958 = vpop.f32.mrf.mxu0
        %v959 = vadd.f32 %v909, %v958
        %960 = vmatmul.f32.gmra.mxu0 %v479
        %v961 = vpop.f32.mrf.mxu0
        %v962 = vadd.f32 %v912, %v961
        %963 = vmatmul.f32.gmra.mxu0 %v488
        %v964 = vpop.f32.mrf.mxu0
        %v965 = vadd.f32 %v915, %v964
        %966 = vmatmul.f32.gmra.mxu0 %v497
        %v967 = vpop.f32.mrf.mxu0
        %v968 = vadd.f32 %v918, %v967
        %969 = vmatmul.f32.gmra.mxu0 %v506
        %v970 = vpop.f32.mrf.mxu0
        %v971 = vadd.f32 %v921, %v970
        %972 = vmatmul.f32.gmra.mxu0 %v515
        %v973 = vpop.f32.mrf.mxu0
        %v974 = vadd.f32 %v924, %v973
        %975 = vmatmul.f32.gmra.mxu0 %v524
        %v976 = vpop.f32.mrf.mxu0
        %v977 = vadd.f32 %v927, %v976
        %978 = vdwg.mxu0
        %979 = vmatpush.msra.mxu0 %v657
        %980 = vmatpush.msra.mxu0 %v655
        %981 = vmatpush.msra.mxu0 %v653
        %982 = vmatpush.msra.mxu0 %v651
        %983 = vmatpush.msra.mxu0 %v649
        %984 = vmatpush.msra.mxu0 %v647
        %985 = vmatpush.msra.mxu0 %v645
        %986 = vmatpush.msra.mxu0 %v643
        %987 = vmatpush.msra.mxu0 %v641
        %988 = vmatpush.msra.mxu0 %v639
        %989 = vmatpush.msra.mxu0 %v637
        %990 = vmatpush.msra.mxu0 %v635
        %991 = vmatpush.msra.mxu0 %v633
        %992 = vmatpush.msra.mxu0 %v631
        %993 = vmatpush.msra.mxu0 %v629
        %994 = vmatpush.msra.mxu0 %v627
        %995 = vmatmul.f32.gmra.mxu0 %v435
        %v996 = vpop.f32.mrf.mxu0
        %v997 = vadd.f32 %v947, %v996
        %998 = vmatmul.f32.gmra.mxu0 %v444
        %v999 = vpop.f32.mrf.mxu0
        %v1000 = vadd.f32 %v950, %v999
        %1001 = vmatmul.f32.gmra.mxu0 %v453
        %v1002 = vpop.f32.mrf.mxu0
        %v1003 = vadd.f32 %v953, %v1002
        %1004 = vmatmul.f32.gmra.mxu0 %v462
        %v1005 = vpop.f32.mrf.mxu0
        %v1006 = vadd.f32 %v956, %v1005
        %1007 = vmatmul.f32.gmra.mxu0 %v471
        %v1008 = vpop.f32.mrf.mxu0
        %v1009 = vadd.f32 %v959, %v1008
        %1010 = vmatmul.f32.gmra.mxu0 %v480
        %v1011 = vpop.f32.mrf.mxu0
        %v1012 = vadd.f32 %v962, %v1011
        %1013 = vmatmul.f32.gmra.mxu0 %v489
        %v1014 = vpop.f32.mrf.mxu0
        %v1015 = vadd.f32 %v965, %v1014
        %1016 = vmatmul.f32.gmra.mxu0 %v498
        %v1017 = vpop.f32.mrf.mxu0
        %v1018 = vadd.f32 %v968, %v1017
        %1019 = vmatmul.f32.gmra.mxu0 %v507
        %v1020 = vpop.f32.mrf.mxu0
        %v1021 = vadd.f32 %v971, %v1020
        %1022 = vmatmul.f32.gmra.mxu0 %v516
        %v1023 = vpop.f32.mrf.mxu0
        %v1024 = vadd.f32 %v974, %v1023
        %1025 = vmatmul.f32.gmra.mxu0 %v525
        %v1026 = vpop.f32.mrf.mxu0
        %v1027 = vadd.f32 %v977, %v1026
        %1028 = vdwg.mxu0
        %1029 = vmatpush.msra.mxu0 %v689
        %1030 = vmatpush.msra.mxu0 %v687
        %1031 = vmatpush.msra.mxu0 %v685
        %1032 = vmatpush.msra.mxu0 %v683
        %1033 = vmatpush.msra.mxu0 %v681
        %1034 = vmatpush.msra.mxu0 %v679
        %1035 = vmatpush.msra.mxu0 %v677
        %1036 = vmatpush.msra.mxu0 %v675
        %1037 = vmatpush.msra.mxu0 %v673
        %1038 = vmatpush.msra.mxu0 %v671
        %1039 = vmatpush.msra.mxu0 %v669
        %1040 = vmatpush.msra.mxu0 %v667
        %1041 = vmatpush.msra.mxu0 %v665
        %1042 = vmatpush.msra.mxu0 %v663
        %1043 = vmatpush.msra.mxu0 %v661
        %1044 = vmatpush.msra.mxu0 %v659
        %1045 = vmatmul.f32.gmra.mxu0 %v436
        %v1046 = vpop.f32.mrf.mxu0
        %v1047 = vadd.f32 %v997, %v1046
        %1048 = vmatmul.f32.gmra.mxu0 %v445
        %v1049 = vpop.f32.mrf.mxu0
        %v1050 = vadd.f32 %v1000, %v1049
        %1051 = vmatmul.f32.gmra.mxu0 %v454
        %v1052 = vpop.f32.mrf.mxu0
        %v1053 = vadd.f32 %v1003, %v1052
        %1054 = vmatmul.f32.gmra.mxu0 %v463
        %v1055 = vpop.f32.mrf.mxu0
        %v1056 = vadd.f32 %v1006, %v1055
        %1057 = vmatmul.f32.gmra.mxu0 %v472
        %v1058 = vpop.f32.mrf.mxu0
        %v1059 = vadd.f32 %v1009, %v1058
        %1060 = vmatmul.f32.gmra.mxu0 %v481
        %v1061 = vpop.f32.mrf.mxu0
        %v1062 = vadd.f32 %v1012, %v1061
        %1063 = vmatmul.f32.gmra.mxu0 %v490
        %v1064 = vpop.f32.mrf.mxu0
        %v1065 = vadd.f32 %v1015, %v1064
        %1066 = vmatmul.f32.gmra.mxu0 %v499
        %v1067 = vpop.f32.mrf.mxu0
        %v1068 = vadd.f32 %v1018, %v1067
        %1069 = vmatmul.f32.gmra.mxu0 %v508
        %v1070 = vpop.f32.mrf.mxu0
        %v1071 = vadd.f32 %v1021, %v1070
        %1072 = vmatmul.f32.gmra.mxu0 %v517
        %v1073 = vpop.f32.mrf.mxu0
        %v1074 = vadd.f32 %v1024, %v1073
        %1075 = vmatmul.f32.gmra.mxu0 %v526
        %v1076 = vpop.f32.mrf.mxu0
        %v1077 = vadd.f32 %v1027, %v1076
        %1078 = vdwg.mxu0
        %1079 = vmatpush.msra.mxu0 %v721
        %1080 = vmatpush.msra.mxu0 %v719
        %1081 = vmatpush.msra.mxu0 %v717
        %1082 = vmatpush.msra.mxu0 %v715
        %1083 = vmatpush.msra.mxu0 %v713
        %1084 = vmatpush.msra.mxu0 %v711
        %1085 = vmatpush.msra.mxu0 %v709
        %1086 = vmatpush.msra.mxu0 %v707
        %1087 = vmatpush.msra.mxu0 %v705
        %1088 = vmatpush.msra.mxu0 %v703
        %1089 = vmatpush.msra.mxu0 %v701
        %1090 = vmatpush.msra.mxu0 %v699
        %1091 = vmatpush.msra.mxu0 %v697
        %1092 = vmatpush.msra.mxu0 %v695
        %1093 = vmatpush.msra.mxu0 %v693
        %1094 = vmatpush.msra.mxu0 %v691
        %1095 = vmatmul.f32.gmra.mxu0 %v437
        %v1096 = vpop.f32.mrf.mxu0
        %v1097 = vadd.f32 %v1047, %v1096
        %1098 = vmatmul.f32.gmra.mxu0 %v446
        %v1099 = vpop.f32.mrf.mxu0
        %v1100 = vadd.f32 %v1050, %v1099
        %1101 = vmatmul.f32.gmra.mxu0 %v455
        %v1102 = vpop.f32.mrf.mxu0
        %v1103 = vadd.f32 %v1053, %v1102
        %1104 = vmatmul.f32.gmra.mxu0 %v464
        %v1105 = vpop.f32.mrf.mxu0
        %v1106 = vadd.f32 %v1056, %v1105
        %1107 = vmatmul.f32.gmra.mxu0 %v473
        %v1108 = vpop.f32.mrf.mxu0
        %v1109 = vadd.f32 %v1059, %v1108
        %1110 = vmatmul.f32.gmra.mxu0 %v482
        %v1111 = vpop.f32.mrf.mxu0
        %v1112 = vadd.f32 %v1062, %v1111
        %1113 = vmatmul.f32.gmra.mxu0 %v491
        %v1114 = vpop.f32.mrf.mxu0
        %v1115 = vadd.f32 %v1065, %v1114
        %1116 = vmatmul.f32.gmra.mxu0 %v500
        %v1117 = vpop.f32.mrf.mxu0
        %v1118 = vadd.f32 %v1068, %v1117
        %1119 = vmatmul.f32.gmra.mxu0 %v509
        %v1120 = vpop.f32.mrf.mxu0
        %v1121 = vadd.f32 %v1071, %v1120
        %1122 = vmatmul.f32.gmra.mxu0 %v518
        %v1123 = vpop.f32.mrf.mxu0
        %v1124 = vadd.f32 %v1074, %v1123
        %1125 = vmatmul.f32.gmra.mxu0 %v527
        %v1126 = vpop.f32.mrf.mxu0
        %v1127 = vadd.f32 %v1077, %v1126
        %1128 = vdwg.mxu0
        %1129 = vmatpush.msra.mxu0 %v753
        %1130 = vmatpush.msra.mxu0 %v751
        %1131 = vmatpush.msra.mxu0 %v749
        %1132 = vmatpush.msra.mxu0 %v747
        %1133 = vmatpush.msra.mxu0 %v745
        %1134 = vmatpush.msra.mxu0 %v743
        %1135 = vmatpush.msra.mxu0 %v741
        %1136 = vmatpush.msra.mxu0 %v739
        %1137 = vmatpush.msra.mxu0 %v737
        %1138 = vmatpush.msra.mxu0 %v735
        %1139 = vmatpush.msra.mxu0 %v733
        %1140 = vmatpush.msra.mxu0 %v731
        %1141 = vmatpush.msra.mxu0 %v729
        %1142 = vmatpush.msra.mxu0 %v727
        %1143 = vmatpush.msra.mxu0 %v725
        %1144 = vmatpush.msra.mxu0 %v723
        %1145 = vmatmul.f32.gmra.mxu0 %v438
        %v1146 = vpop.f32.mrf.mxu0
        %v1147 = vadd.f32 %v1097, %v1146
        %1148 = vmatmul.f32.gmra.mxu0 %v447
        %v1149 = vpop.f32.mrf.mxu0
        %v1150 = vadd.f32 %v1100, %v1149
        %1151 = vmatmul.f32.gmra.mxu0 %v456
        %v1152 = vpop.f32.mrf.mxu0
        %v1153 = vadd.f32 %v1103, %v1152
        %1154 = vmatmul.f32.gmra.mxu0 %v465
        %v1155 = vpop.f32.mrf.mxu0
        %v1156 = vadd.f32 %v1106, %v1155
        %1157 = vmatmul.f32.gmra.mxu0 %v474
        %v1158 = vpop.f32.mrf.mxu0
        %v1159 = vadd.f32 %v1109, %v1158
        %1160 = vmatmul.f32.gmra.mxu0 %v483
        %v1161 = vpop.f32.mrf.mxu0
        %v1162 = vadd.f32 %v1112, %v1161
        %1163 = vmatmul.f32.gmra.mxu0 %v492
        %v1164 = vpop.f32.mrf.mxu0
        %v1165 = vadd.f32 %v1115, %v1164
        %1166 = vmatmul.f32.gmra.mxu0 %v501
        %v1167 = vpop.f32.mrf.mxu0
        %v1168 = vadd.f32 %v1118, %v1167
        %1169 = vmatmul.f32.gmra.mxu0 %v510
        %v1170 = vpop.f32.mrf.mxu0
        %v1171 = vadd.f32 %v1121, %v1170
        %1172 = vmatmul.f32.gmra.mxu0 %v519
        %v1173 = vpop.f32.mrf.mxu0
        %v1174 = vadd.f32 %v1124, %v1173
        %1175 = vmatmul.f32.gmra.mxu0 %v528
        %v1176 = vpop.f32.mrf.mxu0
        %v1177 = vadd.f32 %v1127, %v1176
        %1178 = vdwg.mxu0
        %1179 = vmatpush.msra.mxu0 %v785
        %1180 = vmatpush.msra.mxu0 %v783
        %1181 = vmatpush.msra.mxu0 %v781
        %1182 = vmatpush.msra.mxu0 %v779
        %1183 = vmatpush.msra.mxu0 %v777
        %1184 = vmatpush.msra.mxu0 %v775
        %1185 = vmatpush.msra.mxu0 %v773
        %1186 = vmatpush.msra.mxu0 %v771
        %1187 = vmatpush.msra.mxu0 %v769
        %1188 = vmatpush.msra.mxu0 %v767
        %1189 = vmatpush.msra.mxu0 %v765
        %1190 = vmatpush.msra.mxu0 %v763
        %1191 = vmatpush.msra.mxu0 %v761
        %1192 = vmatpush.msra.mxu0 %v759
        %1193 = vmatpush.msra.mxu0 %v757
        %1194 = vmatpush.msra.mxu0 %v755
        %1195 = vmatmul.f32.gmra.mxu0 %v439
        %v1196 = vpop.f32.mrf.mxu0
        %v1197 = vadd.f32 %v1147, %v1196
        %1198 = vmatmul.f32.gmra.mxu0 %v448
        %v1199 = vpop.f32.mrf.mxu0
        %v1200 = vadd.f32 %v1150, %v1199
        %1201 = vmatmul.f32.gmra.mxu0 %v457
        %v1202 = vpop.f32.mrf.mxu0
        %v1203 = vadd.f32 %v1153, %v1202
        %1204 = vmatmul.f32.gmra.mxu0 %v466
        %v1205 = vpop.f32.mrf.mxu0
        %v1206 = vadd.f32 %v1156, %v1205
        %1207 = vmatmul.f32.gmra.mxu0 %v475
        %v1208 = vpop.f32.mrf.mxu0
        %v1209 = vadd.f32 %v1159, %v1208
        %1210 = vmatmul.f32.gmra.mxu0 %v484
        %v1211 = vpop.f32.mrf.mxu0
        %v1212 = vadd.f32 %v1162, %v1211
        %1213 = vmatmul.f32.gmra.mxu0 %v493
        %v1214 = vpop.f32.mrf.mxu0
        %v1215 = vadd.f32 %v1165, %v1214
        %1216 = vmatmul.f32.gmra.mxu0 %v502
        %v1217 = vpop.f32.mrf.mxu0
        %v1218 = vadd.f32 %v1168, %v1217
        %1219 = vmatmul.f32.gmra.mxu0 %v511
        %v1220 = vpop.f32.mrf.mxu0
        %v1221 = vadd.f32 %v1171, %v1220
        %1222 = vmatmul.f32.gmra.mxu0 %v520
        %v1223 = vpop.f32.mrf.mxu0
        %v1224 = vadd.f32 %v1174, %v1223
        %1225 = vmatmul.f32.gmra.mxu0 %v529
        %v1226 = vpop.f32.mrf.mxu0
        %v1227 = vadd.f32 %v1177, %v1226
        %1228 = vdwg.mxu0
        %1229 = vmatpush.msra.mxu0 0.0
        %1230 = vmatpush.msra.mxu0 0.0
        %1231 = vmatpush.msra.mxu0 0.0
        %1232 = vmatpush.msra.mxu0 0.0
        %1233 = vmatpush.msra.mxu0 0.0
        %1234 = vmatpush.msra.mxu0 0.0
        %1235 = vmatpush.msra.mxu0 0.0
        %1236 = vmatpush.msra.mxu0 0.0
        %1237 = vmatpush.msra.mxu0 0.0
        %1238 = vmatpush.msra.mxu0 0.0
        %1239 = vmatpush.msra.mxu0 0.0
        %1240 = vmatpush.msra.mxu0 0.0
        %1241 = vmatpush.msra.mxu0 %v793
        %1242 = vmatpush.msra.mxu0 %v791
        %1243 = vmatpush.msra.mxu0 %v789
        %1244 = vmatpush.msra.mxu0 %v787
        %1245 = vmatmul.f32.gmra.mxu0 %v797
        %v1246 = vpop.f32.mrf.mxu0
        %v1247 = vadd.f32 %v1197, %v1246
        %1248 = vmatmul.f32.gmra.mxu0 %v800
        %v1249 = vpop.f32.mrf.mxu0
        %v1250 = vadd.f32 %v1200, %v1249
        %1251 = vmatmul.f32.gmra.mxu0 %v803
        %v1252 = vpop.f32.mrf.mxu0
        %v1253 = vadd.f32 %v1203, %v1252
        %1254 = vmatmul.f32.gmra.mxu0 %v806
        %v1255 = vpop.f32.mrf.mxu0
        %v1256 = vadd.f32 %v1206, %v1255
        %1257 = vmatmul.f32.gmra.mxu0 %v809
        %v1258 = vpop.f32.mrf.mxu0
        %v1259 = vadd.f32 %v1209, %v1258
        %1260 = vmatmul.f32.gmra.mxu0 %v812
        %v1261 = vpop.f32.mrf.mxu0
        %v1262 = vadd.f32 %v1212, %v1261
        %1263 = vmatmul.f32.gmra.mxu0 %v815
        %v1264 = vpop.f32.mrf.mxu0
        %v1265 = vadd.f32 %v1215, %v1264
        %1266 = vmatmul.f32.gmra.mxu0 %v818
        %v1267 = vpop.f32.mrf.mxu0
        %v1268 = vadd.f32 %v1218, %v1267
        %1269 = vmatmul.f32.gmra.mxu0 %v821
        %v1270 = vpop.f32.mrf.mxu0
        %v1271 = vadd.f32 %v1221, %v1270
        %1272 = vmatmul.f32.gmra.mxu0 %v824
        %v1273 = vpop.f32.mrf.mxu0
        %v1274 = vadd.f32 %v1224, %v1273
        %1275 = vmatmul.f32.gmra.mxu0 %v827
        %v1276 = vpop.f32.mrf.mxu0
        %v1277 = vadd.f32 %v1227, %v1276
        %1278 = vdwg.mxu0
        %1279 = vmatpush.msra.mxu0 %v562
        %1280 = vmatpush.msra.mxu0 %v560
        %1281 = vmatpush.msra.mxu0 %v558
        %1282 = vmatpush.msra.mxu0 %v556
        %1283 = vmatpush.msra.mxu0 %v554
        %1284 = vmatpush.msra.mxu0 %v552
        %1285 = vmatpush.msra.mxu0 %v550
        %1286 = vmatpush.msra.mxu0 %v548
        %1287 = vmatpush.msra.mxu0 %v546
        %1288 = vmatpush.msra.mxu0 %v544
        %1289 = vmatpush.msra.mxu0 %v542
        %1290 = vmatpush.msra.mxu0 %v540
        %1291 = vmatpush.msra.mxu0 %v538
        %1292 = vmatpush.msra.mxu0 %v536
        %1293 = vmatpush.msra.mxu0 %v534
        %1294 = vmatpush.msra.mxu0 %v532
        %1295 = vmatmul.f32.gmra.mxu0 %v432
        %v1296 = vpop.f32.mrf.mxu0
        %v1297 = vadd.f32 0.0, %v1296
        %1298 = vmatmul.f32.gmra.mxu0 %v441
        %v1299 = vpop.f32.mrf.mxu0
        %v1300 = vadd.f32 0.0, %v1299
        %1301 = vmatmul.f32.gmra.mxu0 %v450
        %v1302 = vpop.f32.mrf.mxu0
        %v1303 = vadd.f32 0.0, %v1302
        %1304 = vmatmul.f32.gmra.mxu0 %v459
        %v1305 = vpop.f32.mrf.mxu0
        %v1306 = vadd.f32 0.0, %v1305
        %1307 = vmatmul.f32.gmra.mxu0 %v468
        %v1308 = vpop.f32.mrf.mxu0
        %v1309 = vadd.f32 0.0, %v1308
        %1310 = vmatmul.f32.gmra.mxu0 %v477
        %v1311 = vpop.f32.mrf.mxu0
        %v1312 = vadd.f32 0.0, %v1311
        %1313 = vmatmul.f32.gmra.mxu0 %v486
        %v1314 = vpop.f32.mrf.mxu0
        %v1315 = vadd.f32 0.0, %v1314
        %1316 = vmatmul.f32.gmra.mxu0 %v495
        %v1317 = vpop.f32.mrf.mxu0
        %v1318 = vadd.f32 0.0, %v1317
        %1319 = vmatmul.f32.gmra.mxu0 %v504
        %v1320 = vpop.f32.mrf.mxu0
        %v1321 = vadd.f32 0.0, %v1320
        %1322 = vmatmul.f32.gmra.mxu0 %v513
        %v1323 = vpop.f32.mrf.mxu0
        %v1324 = vadd.f32 0.0, %v1323
        %1325 = vmatmul.f32.gmra.mxu0 %v522
        %v1326 = vpop.f32.mrf.mxu0
        %v1327 = vadd.f32 0.0, %v1326
        %1328 = vdwg.mxu0
        %1329 = vmatpush.msra.mxu0 %v594
        %1330 = vmatpush.msra.mxu0 %v592
        %1331 = vmatpush.msra.mxu0 %v590
        %1332 = vmatpush.msra.mxu0 %v588
        %1333 = vmatpush.msra.mxu0 %v586
        %1334 = vmatpush.msra.mxu0 %v584
        %1335 = vmatpush.msra.mxu0 %v582
        %1336 = vmatpush.msra.mxu0 %v580
        %1337 = vmatpush.msra.mxu0 %v578
        %1338 = vmatpush.msra.mxu0 %v576
        %1339 = vmatpush.msra.mxu0 %v574
        %1340 = vmatpush.msra.mxu0 %v572
        %1341 = vmatpush.msra.mxu0 %v570
        %1342 = vmatpush.msra.mxu0 %v568
        %1343 = vmatpush.msra.mxu0 %v566
        %1344 = vmatpush.msra.mxu0 %v564
        %1345 = vmatmul.f32.gmra.mxu0 %v433
        %v1346 = vpop.f32.mrf.mxu0
        %v1347 = vadd.f32 %v1297, %v1346
        %1348 = vmatmul.f32.gmra.mxu0 %v442
        %v1349 = vpop.f32.mrf.mxu0
        %v1350 = vadd.f32 %v1300, %v1349
        %1351 = vmatmul.f32.gmra.mxu0 %v451
        %v1352 = vpop.f32.mrf.mxu0
        %v1353 = vadd.f32 %v1303, %v1352
        %1354 = vmatmul.f32.gmra.mxu0 %v460
        %v1355 = vpop.f32.mrf.mxu0
        %v1356 = vadd.f32 %v1306, %v1355
        %1357 = vmatmul.f32.gmra.mxu0 %v469
        %v1358 = vpop.f32.mrf.mxu0
        %v1359 = vadd.f32 %v1309, %v1358
        %1360 = vmatmul.f32.gmra.mxu0 %v478
        %v1361 = vpop.f32.mrf.mxu0
        %v1362 = vadd.f32 %v1312, %v1361
        %1363 = vmatmul.f32.gmra.mxu0 %v487
        %v1364 = vpop.f32.mrf.mxu0
        %v1365 = vadd.f32 %v1315, %v1364
        %1366 = vmatmul.f32.gmra.mxu0 %v496
        %v1367 = vpop.f32.mrf.mxu0
        %v1368 = vadd.f32 %v1318, %v1367
        %1369 = vmatmul.f32.gmra.mxu0 %v505
        %v1370 = vpop.f32.mrf.mxu0
        %v1371 = vadd.f32 %v1321, %v1370
        %1372 = vmatmul.f32.gmra.mxu0 %v514
        %v1373 = vpop.f32.mrf.mxu0
        %v1374 = vadd.f32 %v1324, %v1373
        %1375 = vmatmul.f32.gmra.mxu0 %v523
        %v1376 = vpop.f32.mrf.mxu0
        %v1377 = vadd.f32 %v1327, %v1376
        %1378 = vdwg.mxu0
        %1379 = vmatpush.msra.mxu0 %v626
        %1380 = vmatpush.msra.mxu0 %v624
        %1381 = vmatpush.msra.mxu0 %v622
        %1382 = vmatpush.msra.mxu0 %v620
        %1383 = vmatpush.msra.mxu0 %v618
        %1384 = vmatpush.msra.mxu0 %v616
        %1385 = vmatpush.msra.mxu0 %v614
        %1386 = vmatpush.msra.mxu0 %v612
        %1387 = vmatpush.msra.mxu0 %v610
        %1388 = vmatpush.msra.mxu0 %v608
        %1389 = vmatpush.msra.mxu0 %v606
        %1390 = vmatpush.msra.mxu0 %v604
        %1391 = vmatpush.msra.mxu0 %v602
        %1392 = vmatpush.msra.mxu0 %v600
        %1393 = vmatpush.msra.mxu0 %v598
        %1394 = vmatpush.msra.mxu0 %v596
        %1395 = vmatmul.f32.gmra.mxu0 %v434
        %v1396 = vpop.f32.mrf.mxu0
        %v1397 = vadd.f32 %v1347, %v1396
        %1398 = vmatmul.f32.gmra.mxu0 %v443
        %v1399 = vpop.f32.mrf.mxu0
        %v1400 = vadd.f32 %v1350, %v1399
        %1401 = vmatmul.f32.gmra.mxu0 %v452
        %v1402 = vpop.f32.mrf.mxu0
        %v1403 = vadd.f32 %v1353, %v1402
        %1404 = vmatmul.f32.gmra.mxu0 %v461
        %v1405 = vpop.f32.mrf.mxu0
        %v1406 = vadd.f32 %v1356, %v1405
        %1407 = vmatmul.f32.gmra.mxu0 %v470
        %v1408 = vpop.f32.mrf.mxu0
        %v1409 = vadd.f32 %v1359, %v1408
        %1410 = vmatmul.f32.gmra.mxu0 %v479
        %v1411 = vpop.f32.mrf.mxu0
        %v1412 = vadd.f32 %v1362, %v1411
        %1413 = vmatmul.f32.gmra.mxu0 %v488
        %v1414 = vpop.f32.mrf.mxu0
        %v1415 = vadd.f32 %v1365, %v1414
        %1416 = vmatmul.f32.gmra.mxu0 %v497
        %v1417 = vpop.f32.mrf.mxu0
        %v1418 = vadd.f32 %v1368, %v1417
        %1419 = vmatmul.f32.gmra.mxu0 %v506
        %v1420 = vpop.f32.mrf.mxu0
        %v1421 = vadd.f32 %v1371, %v1420
        %1422 = vmatmul.f32.gmra.mxu0 %v515
        %v1423 = vpop.f32.mrf.mxu0
        %v1424 = vadd.f32 %v1374, %v1423
        %1425 = vmatmul.f32.gmra.mxu0 %v524
        %v1426 = vpop.f32.mrf.mxu0
        %v1427 = vadd.f32 %v1377, %v1426
        %1428 = vdwg.mxu0
        %1429 = vmatpush.msra.mxu0 %v658
        %1430 = vmatpush.msra.mxu0 %v656
        %1431 = vmatpush.msra.mxu0 %v654
        %1432 = vmatpush.msra.mxu0 %v652
        %1433 = vmatpush.msra.mxu0 %v650
        %1434 = vmatpush.msra.mxu0 %v648
        %1435 = vmatpush.msra.mxu0 %v646
        %1436 = vmatpush.msra.mxu0 %v644
        %1437 = vmatpush.msra.mxu0 %v642
        %1438 = vmatpush.msra.mxu0 %v640
        %1439 = vmatpush.msra.mxu0 %v638
        %1440 = vmatpush.msra.mxu0 %v636
        %1441 = vmatpush.msra.mxu0 %v634
        %1442 = vmatpush.msra.mxu0 %v632
        %1443 = vmatpush.msra.mxu0 %v630
        %1444 = vmatpush.msra.mxu0 %v628
        %1445 = vmatmul.f32.gmra.mxu0 %v435
        %v1446 = vpop.f32.mrf.mxu0
        %v1447 = vadd.f32 %v1397, %v1446
        %1448 = vmatmul.f32.gmra.mxu0 %v444
        %v1449 = vpop.f32.mrf.mxu0
        %v1450 = vadd.f32 %v1400, %v1449
        %1451 = vmatmul.f32.gmra.mxu0 %v453
        %v1452 = vpop.f32.mrf.mxu0
        %v1453 = vadd.f32 %v1403, %v1452
        %1454 = vmatmul.f32.gmra.mxu0 %v462
        %v1455 = vpop.f32.mrf.mxu0
        %v1456 = vadd.f32 %v1406, %v1455
        %1457 = vmatmul.f32.gmra.mxu0 %v471
        %v1458 = vpop.f32.mrf.mxu0
        %v1459 = vadd.f32 %v1409, %v1458
        %1460 = vmatmul.f32.gmra.mxu0 %v480
        %v1461 = vpop.f32.mrf.mxu0
        %v1462 = vadd.f32 %v1412, %v1461
        %1463 = vmatmul.f32.gmra.mxu0 %v489
        %v1464 = vpop.f32.mrf.mxu0
        %v1465 = vadd.f32 %v1415, %v1464
        %1466 = vmatmul.f32.gmra.mxu0 %v498
        %v1467 = vpop.f32.mrf.mxu0
        %v1468 = vadd.f32 %v1418, %v1467
        %1469 = vmatmul.f32.gmra.mxu0 %v507
        %v1470 = vpop.f32.mrf.mxu0
        %v1471 = vadd.f32 %v1421, %v1470
        %1472 = vmatmul.f32.gmra.mxu0 %v516
        %v1473 = vpop.f32.mrf.mxu0
        %v1474 = vadd.f32 %v1424, %v1473
        %1475 = vmatmul.f32.gmra.mxu0 %v525
        %v1476 = vpop.f32.mrf.mxu0
        %v1477 = vadd.f32 %v1427, %v1476
        %1478 = vdwg.mxu0
        %1479 = vmatpush.msra.mxu0 %v690
        %1480 = vmatpush.msra.mxu0 %v688
        %1481 = vmatpush.msra.mxu0 %v686
        %1482 = vmatpush.msra.mxu0 %v684
        %1483 = vmatpush.msra.mxu0 %v682
        %1484 = vmatpush.msra.mxu0 %v680
        %1485 = vmatpush.msra.mxu0 %v678
        %1486 = vmatpush.msra.mxu0 %v676
        %1487 = vmatpush.msra.mxu0 %v674
        %1488 = vmatpush.msra.mxu0 %v672
        %1489 = vmatpush.msra.mxu0 %v670
        %1490 = vmatpush.msra.mxu0 %v668
        %1491 = vmatpush.msra.mxu0 %v666
        %1492 = vmatpush.msra.mxu0 %v664
        %1493 = vmatpush.msra.mxu0 %v662
        %1494 = vmatpush.msra.mxu0 %v660
        %1495 = vmatmul.f32.gmra.mxu0 %v436
        %v1496 = vpop.f32.mrf.mxu0
        %v1497 = vadd.f32 %v1447, %v1496
        %1498 = vmatmul.f32.gmra.mxu0 %v445
        %v1499 = vpop.f32.mrf.mxu0
        %v1500 = vadd.f32 %v1450, %v1499
        %1501 = vmatmul.f32.gmra.mxu0 %v454
        %v1502 = vpop.f32.mrf.mxu0
        %v1503 = vadd.f32 %v1453, %v1502
        %1504 = vmatmul.f32.gmra.mxu0 %v463
        %v1505 = vpop.f32.mrf.mxu0
        %v1506 = vadd.f32 %v1456, %v1505
        %1507 = vmatmul.f32.gmra.mxu0 %v472
        %v1508 = vpop.f32.mrf.mxu0
        %v1509 = vadd.f32 %v1459, %v1508
        %1510 = vmatmul.f32.gmra.mxu0 %v481
        %v1511 = vpop.f32.mrf.mxu0
        %v1512 = vadd.f32 %v1462, %v1511
        %1513 = vmatmul.f32.gmra.mxu0 %v490
        %v1514 = vpop.f32.mrf.mxu0
        %v1515 = vadd.f32 %v1465, %v1514
        %1516 = vmatmul.f32.gmra.mxu0 %v499
        %v1517 = vpop.f32.mrf.mxu0
        %v1518 = vadd.f32 %v1468, %v1517
        %1519 = vmatmul.f32.gmra.mxu0 %v508
        %v1520 = vpop.f32.mrf.mxu0
        %v1521 = vadd.f32 %v1471, %v1520
        %1522 = vmatmul.f32.gmra.mxu0 %v517
        %v1523 = vpop.f32.mrf.mxu0
        %v1524 = vadd.f32 %v1474, %v1523
        %1525 = vmatmul.f32.gmra.mxu0 %v526
        %v1526 = vpop.f32.mrf.mxu0
        %v1527 = vadd.f32 %v1477, %v1526
        %1528 = vdwg.mxu0
        %1529 = vmatpush.msra.mxu0 %v722
        %1530 = vmatpush.msra.mxu0 %v720
        %1531 = vmatpush.msra.mxu0 %v718
        %1532 = vmatpush.msra.mxu0 %v716
        %1533 = vmatpush.msra.mxu0 %v714
        %1534 = vmatpush.msra.mxu0 %v712
        %1535 = vmatpush.msra.mxu0 %v710
        %1536 = vmatpush.msra.mxu0 %v708
        %1537 = vmatpush.msra.mxu0 %v706
        %1538 = vmatpush.msra.mxu0 %v704
        %1539 = vmatpush.msra.mxu0 %v702
        %1540 = vmatpush.msra.mxu0 %v700
        %1541 = vmatpush.msra.mxu0 %v698
        %1542 = vmatpush.msra.mxu0 %v696
        %1543 = vmatpush.msra.mxu0 %v694
        %1544 = vmatpush.msra.mxu0 %v692
        %1545 = vmatmul.f32.gmra.mxu0 %v437
        %v1546 = vpop.f32.mrf.mxu0
        %v1547 = vadd.f32 %v1497, %v1546
        %1548 = vmatmul.f32.gmra.mxu0 %v446
        %v1549 = vpop.f32.mrf.mxu0
        %v1550 = vadd.f32 %v1500, %v1549
        %1551 = vmatmul.f32.gmra.mxu0 %v455
        %v1552 = vpop.f32.mrf.mxu0
        %v1553 = vadd.f32 %v1503, %v1552
        %1554 = vmatmul.f32.gmra.mxu0 %v464
        %v1555 = vpop.f32.mrf.mxu0
        %v1556 = vadd.f32 %v1506, %v1555
        %1557 = vmatmul.f32.gmra.mxu0 %v473
        %v1558 = vpop.f32.mrf.mxu0
        %v1559 = vadd.f32 %v1509, %v1558
        %1560 = vmatmul.f32.gmra.mxu0 %v482
        %v1561 = vpop.f32.mrf.mxu0
        %v1562 = vadd.f32 %v1512, %v1561
        %1563 = vmatmul.f32.gmra.mxu0 %v491
        %v1564 = vpop.f32.mrf.mxu0
        %v1565 = vadd.f32 %v1515, %v1564
        %1566 = vmatmul.f32.gmra.mxu0 %v500
        %v1567 = vpop.f32.mrf.mxu0
        %v1568 = vadd.f32 %v1518, %v1567
        %1569 = vmatmul.f32.gmra.mxu0 %v509
        %v1570 = vpop.f32.mrf.mxu0
        %v1571 = vadd.f32 %v1521, %v1570
        %1572 = vmatmul.f32.gmra.mxu0 %v518
        %v1573 = vpop.f32.mrf.mxu0
        %v1574 = vadd.f32 %v1524, %v1573
        %1575 = vmatmul.f32.gmra.mxu0 %v527
        %v1576 = vpop.f32.mrf.mxu0
        %v1577 = vadd.f32 %v1527, %v1576
        %1578 = vdwg.mxu0
        %1579 = vmatpush.msra.mxu0 %v754
        %1580 = vmatpush.msra.mxu0 %v752
        %1581 = vmatpush.msra.mxu0 %v750
        %1582 = vmatpush.msra.mxu0 %v748
        %1583 = vmatpush.msra.mxu0 %v746
        %1584 = vmatpush.msra.mxu0 %v744
        %1585 = vmatpush.msra.mxu0 %v742
        %1586 = vmatpush.msra.mxu0 %v740
        %1587 = vmatpush.msra.mxu0 %v738
        %1588 = vmatpush.msra.mxu0 %v736
        %1589 = vmatpush.msra.mxu0 %v734
        %1590 = vmatpush.msra.mxu0 %v732
        %1591 = vmatpush.msra.mxu0 %v730
        %1592 = vmatpush.msra.mxu0 %v728
        %1593 = vmatpush.msra.mxu0 %v726
        %1594 = vmatpush.msra.mxu0 %v724
        %1595 = vmatmul.f32.gmra.mxu0 %v438
        %v1596 = vpop.f32.mrf.mxu0
        %v1597 = vadd.f32 %v1547, %v1596
        %1598 = vmatmul.f32.gmra.mxu0 %v447
        %v1599 = vpop.f32.mrf.mxu0
        %v1600 = vadd.f32 %v1550, %v1599
        %1601 = vmatmul.f32.gmra.mxu0 %v456
        %v1602 = vpop.f32.mrf.mxu0
        %v1603 = vadd.f32 %v1553, %v1602
        %1604 = vmatmul.f32.gmra.mxu0 %v465
        %v1605 = vpop.f32.mrf.mxu0
        %v1606 = vadd.f32 %v1556, %v1605
        %1607 = vmatmul.f32.gmra.mxu0 %v474
        %v1608 = vpop.f32.mrf.mxu0
        %v1609 = vadd.f32 %v1559, %v1608
        %1610 = vmatmul.f32.gmra.mxu0 %v483
        %v1611 = vpop.f32.mrf.mxu0
        %v1612 = vadd.f32 %v1562, %v1611
        %1613 = vmatmul.f32.gmra.mxu0 %v492
        %v1614 = vpop.f32.mrf.mxu0
        %v1615 = vadd.f32 %v1565, %v1614
        %1616 = vmatmul.f32.gmra.mxu0 %v501
        %v1617 = vpop.f32.mrf.mxu0
        %v1618 = vadd.f32 %v1568, %v1617
        %1619 = vmatmul.f32.gmra.mxu0 %v510
        %v1620 = vpop.f32.mrf.mxu0
        %v1621 = vadd.f32 %v1571, %v1620
        %1622 = vmatmul.f32.gmra.mxu0 %v519
        %v1623 = vpop.f32.mrf.mxu0
        %v1624 = vadd.f32 %v1574, %v1623
        %1625 = vmatmul.f32.gmra.mxu0 %v528
        %v1626 = vpop.f32.mrf.mxu0
        %v1627 = vadd.f32 %v1577, %v1626
        %1628 = vdwg.mxu0
        %1629 = vmatpush.msra.mxu0 %v786
        %1630 = vmatpush.msra.mxu0 %v784
        %1631 = vmatpush.msra.mxu0 %v782
        %1632 = vmatpush.msra.mxu0 %v780
        %1633 = vmatpush.msra.mxu0 %v778
        %1634 = vmatpush.msra.mxu0 %v776
        %1635 = vmatpush.msra.mxu0 %v774
        %1636 = vmatpush.msra.mxu0 %v772
        %1637 = vmatpush.msra.mxu0 %v770
        %1638 = vmatpush.msra.mxu0 %v768
        %1639 = vmatpush.msra.mxu0 %v766
        %1640 = vmatpush.msra.mxu0 %v764
        %1641 = vmatpush.msra.mxu0 %v762
        %1642 = vmatpush.msra.mxu0 %v760
        %1643 = vmatpush.msra.mxu0 %v758
        %1644 = vmatpush.msra.mxu0 %v756
        %1645 = vmatmul.f32.gmra.mxu0 %v439
        %v1646 = vpop.f32.mrf.mxu0
        %v1647 = vadd.f32 %v1597, %v1646
        %1648 = vmatmul.f32.gmra.mxu0 %v448
        %v1649 = vpop.f32.mrf.mxu0
        %v1650 = vadd.f32 %v1600, %v1649
        %1651 = vmatmul.f32.gmra.mxu0 %v457
        %v1652 = vpop.f32.mrf.mxu0
        %v1653 = vadd.f32 %v1603, %v1652
        %1654 = vmatmul.f32.gmra.mxu0 %v466
        %v1655 = vpop.f32.mrf.mxu0
        %v1656 = vadd.f32 %v1606, %v1655
        %1657 = vmatmul.f32.gmra.mxu0 %v475
        %v1658 = vpop.f32.mrf.mxu0
        %v1659 = vadd.f32 %v1609, %v1658
        %1660 = vmatmul.f32.gmra.mxu0 %v484
        %v1661 = vpop.f32.mrf.mxu0
        %v1662 = vadd.f32 %v1612, %v1661
        %1663 = vmatmul.f32.gmra.mxu0 %v493
        %v1664 = vpop.f32.mrf.mxu0
        %v1665 = vadd.f32 %v1615, %v1664
        %1666 = vmatmul.f32.gmra.mxu0 %v502
        %v1667 = vpop.f32.mrf.mxu0
        %v1668 = vadd.f32 %v1618, %v1667
        %1669 = vmatmul.f32.gmra.mxu0 %v511
        %v1670 = vpop.f32.mrf.mxu0
        %v1671 = vadd.f32 %v1621, %v1670
        %1672 = vmatmul.f32.gmra.mxu0 %v520
        %v1673 = vpop.f32.mrf.mxu0
        %v1674 = vadd.f32 %v1624, %v1673
        %1675 = vmatmul.f32.gmra.mxu0 %v529
        %v1676 = vpop.f32.mrf.mxu0
        %v1677 = vadd.f32 %v1627, %v1676
        %1678 = vdwg.mxu0
        %1679 = vmatpush.msra.mxu0 0.0
        %1680 = vmatpush.msra.mxu0 0.0
        %1681 = vmatpush.msra.mxu0 0.0
        %1682 = vmatpush.msra.mxu0 0.0
        %1683 = vmatpush.msra.mxu0 0.0
        %1684 = vmatpush.msra.mxu0 0.0
        %1685 = vmatpush.msra.mxu0 0.0
        %1686 = vmatpush.msra.mxu0 0.0
        %1687 = vmatpush.msra.mxu0 0.0
        %1688 = vmatpush.msra.mxu0 0.0
        %1689 = vmatpush.msra.mxu0 0.0
        %1690 = vmatpush.msra.mxu0 0.0
        %1691 = vmatpush.msra.mxu0 %v794
        %1692 = vmatpush.msra.mxu0 %v792
        %1693 = vmatpush.msra.mxu0 %v790
        %1694 = vmatpush.msra.mxu0 %v788
        %1695 = vmatmul.f32.gmra.mxu0 %v797
        %v1696 = vpop.f32.mrf.mxu0
        %v1697 = vadd.f32 %v1647, %v1696
        %1698 = vmatmul.f32.gmra.mxu0 %v800
        %v1699 = vpop.f32.mrf.mxu0
        %v1700 = vadd.f32 %v1650, %v1699
        %1701 = vmatmul.f32.gmra.mxu0 %v803
        %v1702 = vpop.f32.mrf.mxu0
        %v1703 = vadd.f32 %v1653, %v1702
        %1704 = vmatmul.f32.gmra.mxu0 %v806
        %v1705 = vpop.f32.mrf.mxu0
        %v1706 = vadd.f32 %v1656, %v1705
        %1707 = vmatmul.f32.gmra.mxu0 %v809
        %v1708 = vpop.f32.mrf.mxu0
        %v1709 = vadd.f32 %v1659, %v1708
        %1710 = vmatmul.f32.gmra.mxu0 %v812
        %v1711 = vpop.f32.mrf.mxu0
        %v1712 = vadd.f32 %v1662, %v1711
        %1713 = vmatmul.f32.gmra.mxu0 %v815
        %v1714 = vpop.f32.mrf.mxu0
        %v1715 = vadd.f32 %v1665, %v1714
        %1716 = vmatmul.f32.gmra.mxu0 %v818
        %v1717 = vpop.f32.mrf.mxu0
        %v1718 = vadd.f32 %v1668, %v1717
        %1719 = vmatmul.f32.gmra.mxu0 %v821
        %v1720 = vpop.f32.mrf.mxu0
        %v1721 = vadd.f32 %v1671, %v1720
        %1722 = vmatmul.f32.gmra.mxu0 %v824
        %v1723 = vpop.f32.mrf.mxu0
        %v1724 = vadd.f32 %v1674, %v1723
        %1725 = vmatmul.f32.gmra.mxu0 %v827
        %v1726 = vpop.f32.mrf.mxu0
        %v1727 = vadd.f32 %v1677, %v1726
        %1728 = vdwg.mxu0
        %vm1729 = vcmask 556032
        %v1730 = vsel %vm1729, %v1697, 0.0
        %v1731 = vadd.f32 %v1247, %v1730
        %1732 = vadd.xlane.f32.xlu0 %v1731
        %v1733 = vpop.xlane.xlu0 %1732
        %v1734 = vsel %vm1729, %v1700, 0.0
        %v1735 = vadd.f32 %v1250, %v1734
        %1736 = vadd.xlane.f32.xlu0 %v1735
        %v1737 = vpop.xlane.xlu0 %1736
        %v1738 = vsel %vm1729, %v1703, 0.0
        %v1739 = vadd.f32 %v1253, %v1738
        %1740 = vadd.xlane.f32.xlu0 %v1739
        %v1741 = vpop.xlane.xlu0 %1740
        %v1742 = vsel %vm1729, %v1706, 0.0
        %v1743 = vadd.f32 %v1256, %v1742
        %1744 = vadd.xlane.f32.xlu0 %v1743
        %v1745 = vpop.xlane.xlu0 %1744
        %v1746 = vsel %vm1729, %v1709, 0.0
        %v1747 = vadd.f32 %v1259, %v1746
        %1748 = vadd.xlane.f32.xlu0 %v1747
        %v1749 = vpop.xlane.xlu0 %1748
        %v1750 = vsel %vm1729, %v1712, 0.0
        %v1751 = vadd.f32 %v1262, %v1750
        %1752 = vadd.xlane.f32.xlu0 %v1751
        %v1753 = vpop.xlane.xlu0 %1752
        %v1754 = vsel %vm1729, %v1715, 0.0
        %v1755 = vadd.f32 %v1265, %v1754
        %1756 = vadd.xlane.f32.xlu0 %v1755
        %v1757 = vpop.xlane.xlu0 %1756
        %v1758 = vsel %vm1729, %v1718, 0.0
        %v1759 = vadd.f32 %v1268, %v1758
        %1760 = vadd.xlane.f32.xlu0 %v1759
        %v1761 = vpop.xlane.xlu0 %1760
        %v1762 = vsel %vm1729, %v1721, 0.0
        %v1763 = vadd.f32 %v1271, %v1762
        %1764 = vadd.xlane.f32.xlu0 %v1763
        %v1765 = vpop.xlane.xlu0 %1764
        %v1766 = vsel %vm1729, %v1724, 0.0
        %v1767 = vadd.f32 %v1274, %v1766
        %1768 = vadd.xlane.f32.xlu0 %v1767
        %v1769 = vpop.xlane.xlu0 %1768
        %v1770 = vsel %vm1729, %v1727, 0.0
        %v1771 = vadd.f32 %v1277, %v1770
        %1772 = vadd.xlane.f32.xlu0 %v1771
        %v1773 = vpop.xlane.xlu0 %1772
        %v1774 = vrcp.pop 196.0
        %v1775 = vmul.f32 196.0, %v1774
        %v1776 = vsub.f32 1.0, %v1775
        %v1777 = vmul.f32 %v1774, %v1776
        %v1778 = vadd.f32 %v1774, %v1777
        %vm1779 = vweird.f32 %v1774
        %v1780 = vsel %vm1779, %v1774, %v1778
        %v1781 = vmul.f32 %v1733, %v1780
        %v1782 = vmul.f32 %v1737, %v1780
        %v1783 = vmul.f32 %v1741, %v1780
        %v1784 = vmul.f32 %v1745, %v1780
        %v1785 = vmul.f32 %v1749, %v1780
        %v1786 = vmul.f32 %v1753, %v1780
        %v1787 = vmul.f32 %v1757, %v1780
        %v1788 = vmul.f32 %v1761, %v1780
        %v1789 = vmul.f32 %v1765, %v1780
        %v1790 = vmul.f32 %v1769, %v1780
        %v1791 = vmul.f32 %v1773, %v1780
        %v1792 = vmul.f32 %v1247, %v1247
        %v1793 = vmul.f32 %v1697, %v1697
        %v1794 = vmul.f32 %v1250, %v1250
        %v1795 = vmul.f32 %v1700, %v1700
        %v1796 = vmul.f32 %v1253, %v1253
        %v1797 = vmul.f32 %v1703, %v1703
        %v1798 = vmul.f32 %v1256, %v1256
        %v1799 = vmul.f32 %v1706, %v1706
        %v1800 = vmul.f32 %v1259, %v1259
        %v1801 = vmul.f32 %v1709, %v1709
        %v1802 = vmul.f32 %v1262, %v1262
        %v1803 = vmul.f32 %v1712, %v1712
        %v1804 = vmul.f32 %v1265, %v1265
        %v1805 = vmul.f32 %v1715, %v1715
        %v1806 = vmul.f32 %v1268, %v1268
        %v1807 = vmul.f32 %v1718, %v1718
        %v1808 = vmul.f32 %v1271, %v1271
        %v1809 = vmul.f32 %v1721, %v1721
        %v1810 = vmul.f32 %v1274, %v1274
        %v1811 = vmul.f32 %v1724, %v1724
        %v1812 = vmul.f32 %v1277, %v1277
        %v1813 = vmul.f32 %v1727, %v1727
        %v1814 = vsel %vm1729, %v1793, 0.0
        %v1815 = vadd.f32 %v1792, %v1814
        %1816 = vadd.xlane.f32.xlu0 %v1815
        %v1817 = vpop.xlane.xlu0 %1816
        %v1818 = vsel %vm1729, %v1795, 0.0
        %v1819 = vadd.f32 %v1794, %v1818
        %1820 = vadd.xlane.f32.xlu0 %v1819
        %v1821 = vpop.xlane.xlu0 %1820
        %v1822 = vsel %vm1729, %v1797, 0.0
        %v1823 = vadd.f32 %v1796, %v1822
        %1824 = vadd.xlane.f32.xlu0 %v1823
        %v1825 = vpop.xlane.xlu0 %1824
        %v1826 = vsel %vm1729, %v1799, 0.0
        %v1827 = vadd.f32 %v1798, %v1826
        %1828 = vadd.xlane.f32.xlu0 %v1827
        %v1829 = vpop.xlane.xlu0 %1828
        %v1830 = vsel %vm1729, %v1801, 0.0
        %v1831 = vadd.f32 %v1800, %v1830
        %1832 = vadd.xlane.f32.xlu0 %v1831
        %v1833 = vpop.xlane.xlu0 %1832
        %v1834 = vsel %vm1729, %v1803, 0.0
        %v1835 = vadd.f32 %v1802, %v1834
        %1836 = vadd.xlane.f32.xlu0 %v1835
        %v1837 = vpop.xlane.xlu0 %1836
        %v1838 = vsel %vm1729, %v1805, 0.0
        %v1839 = vadd.f32 %v1804, %v1838
        %1840 = vadd.xlane.f32.xlu0 %v1839
        %v1841 = vpop.xlane.xlu0 %1840
        %v1842 = vsel %vm1729, %v1807, 0.0
        %v1843 = vadd.f32 %v1806, %v1842
        %1844 = vadd.xlane.f32.xlu0 %v1843
        %v1845 = vpop.xlane.xlu0 %1844
        %v1846 = vsel %vm1729, %v1809, 0.0
        %v1847 = vadd.f32 %v1808, %v1846
        %1848 = vadd.xlane.f32.xlu0 %v1847
        %v1849 = vpop.xlane.xlu0 %1848
        %v1850 = vsel %vm1729, %v1811, 0.0
        %v1851 = vadd.f32 %v1810, %v1850
        %1852 = vadd.xlane.f32.xlu0 %v1851
        %v1853 = vpop.xlane.xlu0 %1852
        %v1854 = vsel %vm1729, %v1813, 0.0
        %v1855 = vadd.f32 %v1812, %v1854
        %1856 = vadd.xlane.f32.xlu0 %v1855
        %v1857 = vpop.xlane.xlu0 %1856
        %v1858 = vmul.f32 %v1817, %v1780
        %v1859 = vmul.f32 %v1821, %v1780
        %v1860 = vmul.f32 %v1825, %v1780
        %v1861 = vmul.f32 %v1829, %v1780
        %v1862 = vmul.f32 %v1833, %v1780
        %v1863 = vmul.f32 %v1837, %v1780
        %v1864 = vmul.f32 %v1841, %v1780
        %v1865 = vmul.f32 %v1845, %v1780
        %v1866 = vmul.f32 %v1849, %v1780
        %v1867 = vmul.f32 %v1853, %v1780
        %v1868 = vmul.f32 %v1857, %v1780
        %v1869 = vmul.f32 %v1781, %v1781
        %v1870 = vmul.f32 %v1782, %v1782
        %v1871 = vmul.f32 %v1783, %v1783
        %v1872 = vmul.f32 %v1784, %v1784
        %v1873 = vmul.f32 %v1785, %v1785
        %v1874 = vmul.f32 %v1786, %v1786
        %v1875 = vmul.f32 %v1787, %v1787
        %v1876 = vmul.f32 %v1788, %v1788
        %v1877 = vmul.f32 %v1789, %v1789
        %v1878 = vmul.f32 %v1790, %v1790
        %v1879 = vmul.f32 %v1791, %v1791
        %v1880 = vsub.f32 %v1858, %v1869
        %v1881 = vsub.f32 %v1859, %v1870
        %v1882 = vsub.f32 %v1860, %v1871
        %v1883 = vsub.f32 %v1861, %v1872
        %v1884 = vsub.f32 %v1862, %v1873
        %v1885 = vsub.f32 %v1863, %v1874
        %v1886 = vsub.f32 %v1864, %v1875
        %v1887 = vsub.f32 %v1865, %v1876
        %v1888 = vsub.f32 %v1866, %v1877
        %v1889 = vsub.f32 %v1867, %v1878
        %v1890 = vsub.f32 %v1868, %v1879
        %v1891 = vadd.f32 %v1880, 0.001
        %v1892 = vadd.f32 %v1881, 0.001
        %v1893 = vadd.f32 %v1882, 0.001
        %v1894 = vadd.f32 %v1883, 0.001
        %v1895 = vadd.f32 %v1884, 0.001
        %v1896 = vadd.f32 %v1885, 0.001
        %v1897 = vadd.f32 %v1886, 0.001
        %v1898 = vadd.f32 %v1887, 0.001
        %v1899 = vadd.f32 %v1888, 0.001
        %v1900 = vadd.f32 %v1889, 0.001
        %v1901 = vadd.f32 %v1890, 0.001
        %v1902 = vrsqrt.pop %v1891
        %v1903 = vmul.f32 %v1902, %v1891
        %v1904 = vmul.f32 %v1903, %v1902
        %v1905 = vmul.f32 0.5, %v1904
        %v1906 = vsub.f32 1.5, %v1905
        %v1907 = vmul.f32 %v1902, %v1906
        %vm1908 = vweird.f32 %v1891
        %vm1909 = vweird.f32 %v1902
        %vm1910 = vmor %vm1908, %vm1909
        %v1911 = vsel %vm1910, %v1902, %v1907
        %v1912 = vrsqrt.pop %v1892
        %v1913 = vmul.f32 %v1912, %v1892
        %v1914 = vmul.f32 %v1913, %v1912
        %v1915 = vmul.f32 0.5, %v1914
        %v1916 = vsub.f32 1.5, %v1915
        %v1917 = vmul.f32 %v1912, %v1916
        %vm1918 = vweird.f32 %v1892
        %vm1919 = vweird.f32 %v1912
        %vm1920 = vmor %vm1918, %vm1919
        %v1921 = vsel %vm1920, %v1912, %v1917
        %v1922 = vrsqrt.pop %v1893
        %v1923 = vmul.f32 %v1922, %v1893
        %v1924 = vmul.f32 %v1923, %v1922
        %v1925 = vmul.f32 0.5, %v1924
        %v1926 = vsub.f32 1.5, %v1925
        %v1927 = vmul.f32 %v1922, %v1926
        %vm1928 = vweird.f32 %v1893
        %vm1929 = vweird.f32 %v1922
        %vm1930 = vmor %vm1928, %vm1929
        %v1931 = vsel %vm1930, %v1922, %v1927
        %v1932 = vrsqrt.pop %v1894
        %v1933 = vmul.f32 %v1932, %v1894
        %v1934 = vmul.f32 %v1933, %v1932
        %v1935 = vmul.f32 0.5, %v1934
        %v1936 = vsub.f32 1.5, %v1935
        %v1937 = vmul.f32 %v1932, %v1936
        %vm1938 = vweird.f32 %v1894
        %vm1939 = vweird.f32 %v1932
        %vm1940 = vmor %vm1938, %vm1939
        %v1941 = vsel %vm1940, %v1932, %v1937
        %v1942 = vrsqrt.pop %v1895
        %v1943 = vmul.f32 %v1942, %v1895
        %v1944 = vmul.f32 %v1943, %v1942
        %v1945 = vmul.f32 0.5, %v1944
        %v1946 = vsub.f32 1.5, %v1945
        %v1947 = vmul.f32 %v1942, %v1946
        %vm1948 = vweird.f32 %v1895
        %vm1949 = vweird.f32 %v1942
        %vm1950 = vmor %vm1948, %vm1949
        %v1951 = vsel %vm1950, %v1942, %v1947
        %v1952 = vrsqrt.pop %v1896
        %v1953 = vmul.f32 %v1952, %v1896
        %v1954 = vmul.f32 %v1953, %v1952
        %v1955 = vmul.f32 0.5, %v1954
        %v1956 = vsub.f32 1.5, %v1955
        %v1957 = vmul.f32 %v1952, %v1956
        %vm1958 = vweird.f32 %v1896
        %vm1959 = vweird.f32 %v1952
        %vm1960 = vmor %vm1958, %vm1959
        %v1961 = vsel %vm1960, %v1952, %v1957
        %v1962 = vrsqrt.pop %v1897
        %v1963 = vmul.f32 %v1962, %v1897
        %v1964 = vmul.f32 %v1963, %v1962
        %v1965 = vmul.f32 0.5, %v1964
        %v1966 = vsub.f32 1.5, %v1965
        %v1967 = vmul.f32 %v1962, %v1966
        %vm1968 = vweird.f32 %v1897
        %vm1969 = vweird.f32 %v1962
        %vm1970 = vmor %vm1968, %vm1969
        %v1971 = vsel %vm1970, %v1962, %v1967
        %v1972 = vrsqrt.pop %v1898
        %v1973 = vmul.f32 %v1972, %v1898
        %v1974 = vmul.f32 %v1973, %v1972
        %v1975 = vmul.f32 0.5, %v1974
        %v1976 = vsub.f32 1.5, %v1975
        %v1977 = vmul.f32 %v1972, %v1976
        %vm1978 = vweird.f32 %v1898
        %vm1979 = vweird.f32 %v1972
        %vm1980 = vmor %vm1978, %vm1979
        %v1981 = vsel %vm1980, %v1972, %v1977
        %v1982 = vrsqrt.pop %v1899
        %v1983 = vmul.f32 %v1982, %v1899
        %v1984 = vmul.f32 %v1983, %v1982
        %v1985 = vmul.f32 0.5, %v1984
        %v1986 = vsub.f32 1.5, %v1985
        %v1987 = vmul.f32 %v1982, %v1986
        %vm1988 = vweird.f32 %v1899
        %vm1989 = vweird.f32 %v1982
        %vm1990 = vmor %vm1988, %vm1989
        %v1991 = vsel %vm1990, %v1982, %v1987
        %v1992 = vrsqrt.pop %v1900
        %v1993 = vmul.f32 %v1992, %v1900
        %v1994 = vmul.f32 %v1993, %v1992
        %v1995 = vmul.f32 0.5, %v1994
        %v1996 = vsub.f32 1.5, %v1995
        %v1997 = vmul.f32 %v1992, %v1996
        %vm1998 = vweird.f32 %v1900
        %vm1999 = vweird.f32 %v1992
        %vm2000 = vmor %vm1998, %vm1999
        %v2001 = vsel %vm2000, %v1992, %v1997
        %v2002 = vrsqrt.pop %v1901
        %v2003 = vmul.f32 %v2002, %v1901
        %v2004 = vmul.f32 %v2003, %v2002
        %v2005 = vmul.f32 0.5, %v2004
        %v2006 = vsub.f32 1.5, %v2005
        %v2007 = vmul.f32 %v2002, %v2006
        %vm2008 = vweird.f32 %v1901
        %vm2009 = vweird.f32 %v2002
        %vm2010 = vmor %vm2008, %vm2009
        %v2011 = vsel %vm2010, %v2002, %v2007
        %v2012 = vsub.f32 %v1247, %v1781
        %v2013 = vsub.f32 %v1697, %v1781
        %v2014 = vsub.f32 %v1250, %v1782
        %v2015 = vsub.f32 %v1700, %v1782
        %v2016 = vsub.f32 %v1253, %v1783
        %v2017 = vsub.f32 %v1703, %v1783
        %v2018 = vsub.f32 %v1256, %v1784
        %v2019 = vsub.f32 %v1706, %v1784
        %v2020 = vsub.f32 %v1259, %v1785
        %v2021 = vsub.f32 %v1709, %v1785
        %v2022 = vsub.f32 %v1262, %v1786
        %v2023 = vsub.f32 %v1712, %v1786
        %v2024 = vsub.f32 %v1265, %v1787
        %v2025 = vsub.f32 %v1715, %v1787
        %v2026 = vsub.f32 %v1268, %v1788
        %v2027 = vsub.f32 %v1718, %v1788
        %v2028 = vsub.f32 %v1271, %v1789
        %v2029 = vsub.f32 %v1721, %v1789
        %v2030 = vsub.f32 %v1274, %v1790
        %v2031 = vsub.f32 %v1724, %v1790
        %v2032 = vsub.f32 %v1277, %v1791
        %v2033 = vsub.f32 %v1727, %v1791
        %v2034 = vmul.f32 %v2012, %v1911
        %v2035 = vmul.f32 %v2013, %v1911
        %v2036 = vmul.f32 %v2014, %v1921
        %v2037 = vmul.f32 %v2015, %v1921
        %v2038 = vmul.f32 %v2016, %v1931
        %v2039 = vmul.f32 %v2017, %v1931
        %v2040 = vmul.f32 %v2018, %v1941
        %v2041 = vmul.f32 %v2019, %v1941
        %v2042 = vmul.f32 %v2020, %v1951
        %v2043 = vmul.f32 %v2021, %v1951
        %v2044 = vmul.f32 %v2022, %v1961
        %v2045 = vmul.f32 %v2023, %v1961
        %v2046 = vmul.f32 %v2024, %v1971
        %v2047 = vmul.f32 %v2025, %v1971
        %v2048 = vmul.f32 %v2026, %v1981
        %v2049 = vmul.f32 %v2027, %v1981
        %v2050 = vmul.f32 %v2028, %v1991
        %v2051 = vmul.f32 %v2029, %v1991
        %v2052 = vmul.f32 %v2030, %v2001
        %v2053 = vmul.f32 %v2031, %v2001
        %v2054 = vmul.f32 %v2032, %v2011
        %v2055 = vmul.f32 %v2033, %v2011
        %v2056 = vld [vmem:[%s264] sm:$0xff]
        %v2057 = vld [vmem:[%s264 + $0x8] sm:$0xff]
        %v2058 = vld [vmem:[%s264 + $0x10] sm:$0xff]
        %v2059 = vld [vmem:[%s264 + $0x18] sm:$0xff]
        %v2060 = vld [vmem:[%s264 + $0x20] sm:$0xff]
        %v2061 = vld [vmem:[%s264 + $0x28] sm:$0xff]
        %v2062 = vld [vmem:[%s264 + $0x30] sm:$0xff]
        %v2063 = vld [vmem:[%s264 + $0x38] sm:$0xff]
        %v2064 = vld [vmem:[%s264 + $0x40] sm:$0xff]
        %v2065 = vld [vmem:[%s264 + $0x48] sm:$0xff]
        %v2066 = vld [vmem:[%s264 + $0x50] sm:$0xff]
        %2068 = vset.pattern.permute.xlu0 0
        %2069 = vperm.xlu0 %2068, %v2056
        %v2070 = vpop.permute.xlu0 %2069
        %2073 = vset.pattern.permute.xlu0 0
        %2074 = vperm.xlu0 %2073, %v2057
        %v2075 = vpop.permute.xlu0 %2074
        %2078 = vset.pattern.permute.xlu0 0
        %2079 = vperm.xlu0 %2078, %v2058
        %v2080 = vpop.permute.xlu0 %2079
        %2083 = vset.pattern.permute.xlu0 0
        %2084 = vperm.xlu0 %2083, %v2059
        %v2085 = vpop.permute.xlu0 %2084
        %2088 = vset.pattern.permute.xlu0 0
        %2089 = vperm.xlu0 %2088, %v2060
        %v2090 = vpop.permute.xlu0 %2089
        %2093 = vset.pattern.permute.xlu0 0
        %2094 = vperm.xlu0 %2093, %v2061
        %v2095 = vpop.permute.xlu0 %2094
        %2098 = vset.pattern.permute.xlu0 0
        %2099 = vperm.xlu0 %2098, %v2062
        %v2100 = vpop.permute.xlu0 %2099
        %2103 = vset.pattern.permute.xlu0 0
        %2104 = vperm.xlu0 %2103, %v2063
        %v2105 = vpop.permute.xlu0 %2104
        %2108 = vset.pattern.permute.xlu0 0
        %2109 = vperm.xlu0 %2108, %v2064
        %v2110 = vpop.permute.xlu0 %2109
        %2113 = vset.pattern.permute.xlu0 0
        %2114 = vperm.xlu0 %2113, %v2065
        %v2115 = vpop.permute.xlu0 %2114
        %2118 = vset.pattern.permute.xlu0 0
        %2119 = vperm.xlu0 %2118, %v2066
        %v2120 = vpop.permute.xlu0 %2119
        %v2122 = vmul.f32 %v2034, %v2070
        %v2123 = vmul.f32 %v2035, %v2070
        %v2124 = vmul.f32 %v2036, %v2075
        %v2125 = vmul.f32 %v2037, %v2075
        %v2126 = vmul.f32 %v2038, %v2080
        %v2127 = vmul.f32 %v2039, %v2080
        %v2128 = vmul.f32 %v2040, %v2085
        %v2129 = vmul.f32 %v2041, %v2085
        %v2130 = vmul.f32 %v2042, %v2090
        %v2131 = vmul.f32 %v2043, %v2090
        %v2132 = vmul.f32 %v2044, %v2095
        %v2133 = vmul.f32 %v2045, %v2095
        %v2134 = vmul.f32 %v2046, %v2100
        %v2135 = vmul.f32 %v2047, %v2100
        %v2136 = vmul.f32 %v2048, %v2105
        %v2137 = vmul.f32 %v2049, %v2105
        %v2138 = vmul.f32 %v2050, %v2110
        %v2139 = vmul.f32 %v2051, %v2110
        %v2140 = vmul.f32 %v2052, %v2115
        %v2141 = vmul.f32 %v2053, %v2115
        %v2142 = vmul.f32 %v2054, %v2120
        %v2143 = vmul.f32 %v2055, %v2120
        %v2144 = vld [vmem:[%s270] sm:$0xff]
        %v2145 = vld [vmem:[%s270 + $0x8] sm:$0xff]
        %v2146 = vld [vmem:[%s270 + $0x10] sm:$0xff]
        %v2147 = vld [vmem:[%s270 + $0x18] sm:$0xff]
        %v2148 = vld [vmem:[%s270 + $0x20] sm:$0xff]
        %v2149 = vld [vmem:[%s270 + $0x28] sm:$0xff]
        %v2150 = vld [vmem:[%s270 + $0x30] sm:$0xff]
        %v2151 = vld [vmem:[%s270 + $0x38] sm:$0xff]
        %v2152 = vld [vmem:[%s270 + $0x40] sm:$0xff]
        %v2153 = vld [vmem:[%s270 + $0x48] sm:$0xff]
        %v2154 = vld [vmem:[%s270 + $0x50] sm:$0xff]
        %2156 = vset.pattern.permute.xlu0 0
        %2157 = vperm.xlu0 %2156, %v2144
        %v2158 = vpop.permute.xlu0 %2157
        %2161 = vset.pattern.permute.xlu0 0
        %2162 = vperm.xlu0 %2161, %v2145
        %v2163 = vpop.permute.xlu0 %2162
        %2166 = vset.pattern.permute.xlu0 0
        %2167 = vperm.xlu0 %2166, %v2146
        %v2168 = vpop.permute.xlu0 %2167
        %2171 = vset.pattern.permute.xlu0 0
        %2172 = vperm.xlu0 %2171, %v2147
        %v2173 = vpop.permute.xlu0 %2172
        %2176 = vset.pattern.permute.xlu0 0
        %2177 = vperm.xlu0 %2176, %v2148
        %v2178 = vpop.permute.xlu0 %2177
        %2181 = vset.pattern.permute.xlu0 0
        %2182 = vperm.xlu0 %2181, %v2149
        %v2183 = vpop.permute.xlu0 %2182
        %2186 = vset.pattern.permute.xlu0 0
        %2187 = vperm.xlu0 %2186, %v2150
        %v2188 = vpop.permute.xlu0 %2187
        %2191 = vset.pattern.permute.xlu0 0
        %2192 = vperm.xlu0 %2191, %v2151
        %v2193 = vpop.permute.xlu0 %2192
        %2196 = vset.pattern.permute.xlu0 0
        %2197 = vperm.xlu0 %2196, %v2152
        %v2198 = vpop.permute.xlu0 %2197
        %2201 = vset.pattern.permute.xlu0 0
        %2202 = vperm.xlu0 %2201, %v2153
        %v2203 = vpop.permute.xlu0 %2202
        %2206 = vset.pattern.permute.xlu0 0
        %2207 = vperm.xlu0 %2206, %v2154
        %v2208 = vpop.permute.xlu0 %2207
        %v2210 = vadd.f32 %v2122, %v2158
        %v2211 = vadd.f32 %v2123, %v2158
        %v2212 = vadd.f32 %v2124, %v2163
        %v2213 = vadd.f32 %v2125, %v2163
        %v2214 = vadd.f32 %v2126, %v2168
        %v2215 = vadd.f32 %v2127, %v2168
        %v2216 = vadd.f32 %v2128, %v2173
        %v2217 = vadd.f32 %v2129, %v2173
        %v2218 = vadd.f32 %v2130, %v2178
        %v2219 = vadd.f32 %v2131, %v2178
        %v2220 = vadd.f32 %v2132, %v2183
        %v2221 = vadd.f32 %v2133, %v2183
        %v2222 = vadd.f32 %v2134, %v2188
        %v2223 = vadd.f32 %v2135, %v2188
        %v2224 = vadd.f32 %v2136, %v2193
        %v2225 = vadd.f32 %v2137, %v2193
        %v2226 = vadd.f32 %v2138, %v2198
        %v2227 = vadd.f32 %v2139, %v2198
        %v2228 = vadd.f32 %v2140, %v2203
        %v2229 = vadd.f32 %v2141, %v2203
        %v2230 = vadd.f32 %v2142, %v2208
        %v2231 = vadd.f32 %v2143, %v2208
        %2232 = vst [vmem:[%s252] sm:$0xff] %v2210
        %2233 = vst.msk [vmem:[%s252 + $0x8] sm:$0xff] %vm1729, %v2211
        %2234 = vst [vmem:[%s252 + $0x10] sm:$0xff] %v2212
        %2235 = vst.msk [vmem:[%s252 + $0x18] sm:$0xff] %vm1729, %v2213
        %2236 = vst [vmem:[%s252 + $0x20] sm:$0xff] %v2214
        %2237 = vst.msk [vmem:[%s252 + $0x28] sm:$0xff] %vm1729, %v2215
        %2238 = vst [vmem:[%s252 + $0x30] sm:$0xff] %v2216
        %2239 = vst.msk [vmem:[%s252 + $0x38] sm:$0xff] %vm1729, %v2217
        %2240 = vst [vmem:[%s252 + $0x40] sm:$0xff] %v2218
        %2241 = vst.msk [vmem:[%s252 + $0x48] sm:$0xff] %vm1729, %v2219
        %2242 = vst [vmem:[%s252 + $0x50] sm:$0xff] %v2220
        %2243 = vst.msk [vmem:[%s252 + $0x58] sm:$0xff] %vm1729, %v2221
        %2244 = vst [vmem:[%s252 + $0x60] sm:$0xff] %v2222
        %2245 = vst.msk [vmem:[%s252 + $0x68] sm:$0xff] %vm1729, %v2223
        %2246 = vst [vmem:[%s252 + $0x70] sm:$0xff] %v2224
        %2247 = vst.msk [vmem:[%s252 + $0x78] sm:$0xff] %vm1729, %v2225
        %2248 = vst [vmem:[%s252 + $0x80] sm:$0xff] %v2226
        %2249 = vst.msk [vmem:[%s252 + $0x88] sm:$0xff] %vm1729, %v2227
        %2250 = vst [vmem:[%s252 + $0x90] sm:$0xff] %v2228
        %2251 = vst.msk [vmem:[%s252 + $0x98] sm:$0xff] %vm1729, %v2229
        %2252 = vst [vmem:[%s252 + $0xa0] sm:$0xff] %v2230
        %2253 = vst.msk [vmem:[%s252 + $0xa8] sm:$0xff] %vm1729, %v2231
        %s2254 = sand.u32 %s147, 1
        %s2255 = scalar_lea.sflag [#allocation3], %s2254
        %s2256 = sand.u32 %s147, 1
        %s2257 = smul.addr %s2256, 176
        %s2258 = scalar_lea.vmem [#allocation2], %s2257
        // Predicated region
        $region41: #{tpu_custom_call.1} parent=39 // pred_check
          %p2259 = pneg %p157
        $region42: #{tpu_custom_call.1} parent=39 // pred_check_branch
          %2261 = sbr.rel (%p2259) target = $region44
        $region43: #{tpu_custom_call.1} parent=39 // pred_region
          %s2262 = smul.u32 11, %s19
          %2264 = vsyncadd %s2255, 0
          %s2265 = smul.addr %s2262, 2
          %s2266 = smul.addr %s2265, 8
          %s2267 = scalar_lea.hbm %s5, %s2266
          %s2268 = sshll.u32 %s2258, 4
          %s2269 = int_to_ptr.vmem [resolvable:$true] %s2268
          %s2270 = sshll.u32 %s2267, 4
          %s2271 = int_to_ptr.hbm [resolvable:$true] %s2270
          %2276 = dma.vmem_to_hbm [thread:$0]  %s2269, 2816, %s2271, %s2255, 256, 256, 16
        $region44: #{tpu_custom_call.1} parent=39 // pred_fallthru
          _
      $region40: #{tpu_custom_call.1} parent=5 // pred_fallthru
        _
      %p2277 = scmp.le.s32.totalorder 2, %s14
      // Predicated region
      $region45: #{tpu_custom_call.1} parent=5 // pred_check
        %p2278 = pneg %p2277
      $region46: #{tpu_custom_call.1} parent=5 // pred_check_branch
        %2280 = sbr.rel (%p2278) target = $region48
      $region47: #{tpu_custom_call.1} parent=5 // pred_region
        %s2281 = ssub.s32 %s14, 2
        // Predicated region
        $region49: #{tpu_custom_call.1} parent=47 // pred_check
          %p2282 = pneg %p163
        $region50: #{tpu_custom_call.1} parent=47 // pred_check_branch
          %2284 = sbr.rel (%p2282) target = $region52
        $region51: #{tpu_custom_call.1} parent=47 // pred_region
          %s2285 = sand.u32 %s148, 1
          %s2286 = scalar_lea.sflag [#allocation3], %s2285
          %s2287 = sand.u32 %s148, 1
          %s2288 = smul.addr %s2287, 176
          %s2289 = scalar_lea.vmem [#allocation2], %s2288
          %2291 = dma.done %s2286, 2816
        $region52: #{tpu_custom_call.1} parent=47 // pred_fallthru
          _
      $region48: #{tpu_custom_call.1} parent=5 // pred_fallthru
        _
    $region6: #{tpu_custom_call.1} parent=1 // loop_footer
      %s18 = sadd.s32 1, %s14
    $region7: #{tpu_custom_call.1} parent=1 // loop_footer_branch
      %13 = sbr.rel target = $region3
    $region8: #{tpu_custom_call.1} parent=1 // loop_exit
      _
    %2292 = vsyncpa [#allocation3], 1
    %s2293 = scalar_lea.sflag [#allocation3], 1
    %2294 = vsyncpa %s2293, 1

</llo_original>
